<compile_context>
chip_gen: v5e
topology: v5e:2x2
jax: 0.10.0
libtpu: 0.0.40
codegen_flags: <defaults>
</compile_context>

<pallas_src>
from functools import partial

import jax
import jax.numpy as jnp
from jax.experimental import pallas as pl
from jax.experimental.pallas import tpu as pltpu


def _round_up(x, m):
    return (x + m - 1) // m * m


def _conv_bn_relu_kernel(x0_ref, x1_ref, x2_ref, w_ref, s_ref, b_ref, o_ref,
                         *, H, W, Cin_p, Cout_p):
    # x{0,1,2}_ref : (H+2, W+2, Cin_p) bf16 -- padded input planes d, d+1, d+2
    # w_ref        : (27*Cin_p, Cout_p) bf16 -- (kd,kh,kw,ci)-major im2col weights
    # s_ref, b_ref : (1, Cout_p) f32 -- fused BN scale / bias
    # o_ref        : (H*W, Cout_p) f32 -- one output depth plane (lane-dense)
    parts = []
    for x_ref in (x0_ref, x1_ref, x2_ref):          # kd = 0, 1, 2
        plane = x_ref[...]                          # (H+2, W+2, Cin_p)
        for kh in range(3):
            for kw in range(3):
                parts.append(plane[kh:kh + H, kw:kw + W, :].reshape(H * W, Cin_p))
    patch = jnp.concatenate(parts, axis=-1)         # (H*W, 27*Cin_p) bf16 im2col
    acc = jnp.dot(patch, w_ref[...], preferred_element_type=jnp.float32)
    y = jnp.maximum(acc * s_ref[...] + b_ref[...], 0.0)   # BN(eval) + ReLU, f32
    o_ref[...] = y.astype(o_ref.dtype)


def conv_block_forward(x_ncdhw, weight_oidhw, conv_bias, gamma, beta,
                       running_mean, running_var, eps=1e-5):
    """ConvolutionalBlock.forward: Conv3d(3,1,1) -> BatchNorm3d(eval) -> ReLU."""
    N, Cin, D, H, W = x_ncdhw.shape
    Cout = weight_oidhw.shape[0]
    Cin_p = _round_up(Cin, 8)
    Cout_p = _round_up(Cout, 128)

    # NCDHW -> NDHWC (bf16), halo-pad D/H/W by 1, zero-pad channels to Cin_p.
    # TODO(synk): jnp.pad materializes a padded copy in HBM; in-kernel halo handling
    #             (pl.when zero-fill on boundary taps) would remove that traffic.
    x = jnp.transpose(x_ncdhw, (0, 2, 3, 4, 1)).astype(jnp.bfloat16)
    xpad = jnp.pad(x, ((0, 0), (1, 1), (1, 1), (1, 1), (0, Cin_p - Cin)))

    # (Cout, Cin, 3,3,3) -> (3,3,3,Cin_p,Cout_p) -> (27*Cin_p, Cout_p), bf16.
    w = jnp.transpose(weight_oidhw, (2, 3, 4, 1, 0)).astype(jnp.bfloat16)
    w = jnp.pad(w, ((0, 0), (0, 0), (0, 0), (0, Cin_p - Cin), (0, Cout_p - Cout)))
    w = w.reshape(27 * Cin_p, Cout_p)

    # Fold conv bias + eval-mode BatchNorm into a per-channel affine (f32).
    # TODO(synk): training-mode BN (batch statistics) not implemented; eval-mode
    #             running-stats BN is fused into the kernel instead.
    scale = gamma / jnp.sqrt(running_var + eps)
    bias = (conv_bias - running_mean) * scale + beta
    scale_p = jnp.pad(scale.astype(jnp.float32), (0, Cout_p - Cout)).reshape(1, Cout_p)
    bias_p = jnp.pad(bias.astype(jnp.float32), (0, Cout_p - Cout)).reshape(1, Cout_p)

    def x_spec(kd):
        # 3-plane depth slab: same padded array, depth index shifted by the tap.
        return pl.BlockSpec((None, None, H + 2, W + 2, Cin_p),
                            lambda n, d: (n, d + kd, 0, 0, 0))

    out = pl.pallas_call(
        partial(_conv_bn_relu_kernel, H=H, W=W, Cin_p=Cin_p, Cout_p=Cout_p),
        out_shape=jax.ShapeDtypeStruct((N, D, H * W, Cout_p), jnp.float32),
        grid_spec=pltpu.PrefetchScalarGridSpec(
            num_scalar_prefetch=0,
            grid=(N, D),
            in_specs=[
                x_spec(0), x_spec(1), x_spec(2),
                pl.BlockSpec((27 * Cin_p, Cout_p), lambda n, d: (0, 0)),
                pl.BlockSpec((1, Cout_p), lambda n, d: (0, 0)),
                pl.BlockSpec((1, Cout_p), lambda n, d: (0, 0)),
            ],
            out_specs=pl.BlockSpec((None, None, H * W, Cout_p),
                                   lambda n, d: (n, d, 0, 0)),
        ),
        compiler_params=pltpu.CompilerParams(
            dimension_semantics=("parallel", "parallel")),
    )(xpad, xpad, xpad, w, scale_p, bias_p)

    # (N, D, H*W, Cout_p) -> (N, D, H, W, Cout) -> PyTorch NCDHW
    out = out.reshape(N, D, H, W, Cout_p)[..., :Cout]
    return jnp.transpose(out, (0, 4, 1, 2, 3))


def _reference(x_ncdhw, weight_oidhw, conv_bias, gamma, beta,
               running_mean, running_var, eps=1e-5):
    y = jax.lax.conv_general_dilated(
        x_ncdhw.astype(jnp.float32), weight_oidhw.astype(jnp.float32),
        window_strides=(1, 1, 1), padding=((1, 1), (1, 1), (1, 1)),
        dimension_numbers=("NCDHW", "OIDHW", "NCDHW"))
    y = y + conv_bias[None, :, None, None, None]
    y = (y - running_mean[None, :, None, None, None]) / jnp.sqrt(
        running_var[None, :, None, None, None] + eps)
    y = y * gamma[None, :, None, None, None] + beta[None, :, None, None, None]
    return jnp.maximum(y, 0.0)


if __name__ == "__main__":
    key = jax.random.PRNGKey(0)
    k_x, k_w, k_b, k_g, k_be, k_m, k_v = jax.random.split(key, 7)

    N, Cin, Cout, D, H, W = 2, 4, 8, 8, 8, 8
    x = jax.random.normal(k_x, (N, Cin, D, H, W), dtype=jnp.float32)

    # Deterministic synthetic parameters (shapes from nn.Conv3d / nn.BatchNorm3d).
    weight = jax.random.normal(k_w, (Cout, Cin, 3, 3, 3), dtype=jnp.float32) * 0.1
    conv_bias = jax.random.normal(k_b, (Cout,), dtype=jnp.float32) * 0.1
    gamma = 1.0 + 0.1 * jax.random.normal(k_g, (Cout,), dtype=jnp.float32)
    beta = 0.1 * jax.random.normal(k_be, (Cout,), dtype=jnp.float32)
    running_mean = 0.1 * jax.random.normal(k_m, (Cout,), dtype=jnp.float32)
    running_var = 1.0 + 0.1 * jnp.abs(jax.random.normal(k_v, (Cout,), dtype=jnp.float32))

    out = conv_block_forward(x, weight, conv_bias, gamma, beta,
                             running_mean, running_var)
    out = jax.block_until_ready(out)
    assert out.shape == (N, Cout, D, H, W)

    # Compare against a reference computed on bf16-rounded x/weights (the kernel
    # feeds the MXU in bf16 with f32 accumulation), so the tolerance stays tight.
    x_bf = x.astype(jnp.bfloat16).astype(jnp.float32)
    w_bf = weight.astype(jnp.bfloat16).astype(jnp.float32)
    ref = _reference(x_bf, w_bf, conv_bias, gamma, beta, running_mean, running_var)
    assert jnp.allclose(out, ref, atol=2e-3, rtol=2e-3), "mismatch vs reference"

    print("KERNEL_OK")
</pallas_src>

<mosaic_0001>
module attributes {stable_mosaic.version = 11 : i64} {
  func.func @_conv_bn_relu_kernel(%arg0: i32, %arg1: i32, %arg2: memref<1x1x10x10x8xbf16, #tpu.memory_space<vmem>>, %arg3: memref<1x1x10x10x8xbf16, #tpu.memory_space<vmem>>, %arg4: memref<1x1x10x10x8xbf16, #tpu.memory_space<vmem>>, %arg5: memref<216x128xbf16, #tpu.memory_space<vmem>>, %arg6: memref<1x128xf32, #tpu.memory_space<vmem>>, %arg7: memref<1x128xf32, #tpu.memory_space<vmem>>, %arg8: memref<1x1x64x128xf32, #tpu.memory_space<vmem>>) attributes {dimension_semantics = [#tpu.dimension_semantics<parallel>, #tpu.dimension_semantics<parallel>], iteration_bounds = array<i64: 2, 8>, scalar_prefetch = 0 : i64, scratch_operands = 0 : i64, tpu.core_type = #tpu.core_type<tc>, window_params = [{transform_indices = @transform_0, window_bounds = array<i64: 1, 1, 10, 10, 8>}, {transform_indices = @transform_1, window_bounds = array<i64: 1, 1, 10, 10, 8>}, {transform_indices = @transform_2, window_bounds = array<i64: 1, 1, 10, 10, 8>}, {pipeline_mode = #tpu.pipeline_mode<synchronous>, transform_indices = @transform_3, window_bounds = array<i64: 216, 128>}, {pipeline_mode = #tpu.pipeline_mode<synchronous>, transform_indices = @transform_4, window_bounds = array<i64: 1, 128>}, {pipeline_mode = #tpu.pipeline_mode<synchronous>, transform_indices = @transform_5, window_bounds = array<i64: 1, 128>}, {transform_indices = @transform_6, window_bounds = array<i64: 1, 1, 64, 128>}]} {
    %c0 = arith.constant 0 : index
    %c0_0 = arith.constant 0 : index
    %c0_1 = arith.constant 0 : index
    %c0_2 = arith.constant 0 : index
    %c0_3 = arith.constant 0 : index
    %0 = vector.load %arg2[%c0, %c0_0, %c0_1, %c0_2, %c0_3] : memref<1x1x10x10x8xbf16, #tpu.memory_space<vmem>>, vector<1x1x10x10x8xbf16>
    %1 = vector.shape_cast %0 : vector<1x1x10x10x8xbf16> to vector<10x10x8xbf16>
    %2 = vector.extract_strided_slice %1 {offsets = [0, 0, 0], sizes = [8, 8, 8], strides = [1, 1, 1]} : vector<10x10x8xbf16> to vector<8x8x8xbf16>
    %3 = vector.shape_cast %2 : vector<8x8x8xbf16> to vector<64x8xbf16>
    %4 = vector.extract_strided_slice %1 {offsets = [0, 1, 0], sizes = [8, 8, 8], strides = [1, 1, 1]} : vector<10x10x8xbf16> to vector<8x8x8xbf16>
    %5 = vector.shape_cast %4 : vector<8x8x8xbf16> to vector<64x8xbf16>
    %6 = vector.extract_strided_slice %1 {offsets = [0, 2, 0], sizes = [8, 8, 8], strides = [1, 1, 1]} : vector<10x10x8xbf16> to vector<8x8x8xbf16>
    %7 = vector.shape_cast %6 : vector<8x8x8xbf16> to vector<64x8xbf16>
    %8 = vector.extract_strided_slice %1 {offsets = [1, 0, 0], sizes = [8, 8, 8], strides = [1, 1, 1]} : vector<10x10x8xbf16> to vector<8x8x8xbf16>
    %9 = vector.shape_cast %8 : vector<8x8x8xbf16> to vector<64x8xbf16>
    %10 = vector.extract_strided_slice %1 {offsets = [1, 1, 0], sizes = [8, 8, 8], strides = [1, 1, 1]} : vector<10x10x8xbf16> to vector<8x8x8xbf16>
    %11 = vector.shape_cast %10 : vector<8x8x8xbf16> to vector<64x8xbf16>
    %12 = vector.extract_strided_slice %1 {offsets = [1, 2, 0], sizes = [8, 8, 8], strides = [1, 1, 1]} : vector<10x10x8xbf16> to vector<8x8x8xbf16>
    %13 = vector.shape_cast %12 : vector<8x8x8xbf16> to vector<64x8xbf16>
    %14 = vector.extract_strided_slice %1 {offsets = [2, 0, 0], sizes = [8, 8, 8], strides = [1, 1, 1]} : vector<10x10x8xbf16> to vector<8x8x8xbf16>
    %15 = vector.shape_cast %14 : vector<8x8x8xbf16> to vector<64x8xbf16>
    %16 = vector.extract_strided_slice %1 {offsets = [2, 1, 0], sizes = [8, 8, 8], strides = [1, 1, 1]} : vector<10x10x8xbf16> to vector<8x8x8xbf16>
    %17 = vector.shape_cast %16 : vector<8x8x8xbf16> to vector<64x8xbf16>
    %18 = vector.extract_strided_slice %1 {offsets = [2, 2, 0], sizes = [8, 8, 8], strides = [1, 1, 1]} : vector<10x10x8xbf16> to vector<8x8x8xbf16>
    %19 = vector.shape_cast %18 : vector<8x8x8xbf16> to vector<64x8xbf16>
    %c0_4 = arith.constant 0 : index
    %c0_5 = arith.constant 0 : index
    %c0_6 = arith.constant 0 : index
    %c0_7 = arith.constant 0 : index
    %c0_8 = arith.constant 0 : index
    %20 = vector.load %arg3[%c0_4, %c0_5, %c0_6, %c0_7, %c0_8] : memref<1x1x10x10x8xbf16, #tpu.memory_space<vmem>>, vector<1x1x10x10x8xbf16>
    %21 = vector.shape_cast %20 : vector<1x1x10x10x8xbf16> to vector<10x10x8xbf16>
    %22 = vector.extract_strided_slice %21 {offsets = [0, 0, 0], sizes = [8, 8, 8], strides = [1, 1, 1]} : vector<10x10x8xbf16> to vector<8x8x8xbf16>
    %23 = vector.shape_cast %22 : vector<8x8x8xbf16> to vector<64x8xbf16>
    %24 = vector.extract_strided_slice %21 {offsets = [0, 1, 0], sizes = [8, 8, 8], strides = [1, 1, 1]} : vector<10x10x8xbf16> to vector<8x8x8xbf16>
    %25 = vector.shape_cast %24 : vector<8x8x8xbf16> to vector<64x8xbf16>
    %26 = vector.extract_strided_slice %21 {offsets = [0, 2, 0], sizes = [8, 8, 8], strides = [1, 1, 1]} : vector<10x10x8xbf16> to vector<8x8x8xbf16>
    %27 = vector.shape_cast %26 : vector<8x8x8xbf16> to vector<64x8xbf16>
    %28 = vector.extract_strided_slice %21 {offsets = [1, 0, 0], sizes = [8, 8, 8], strides = [1, 1, 1]} : vector<10x10x8xbf16> to vector<8x8x8xbf16>
    %29 = vector.shape_cast %28 : vector<8x8x8xbf16> to vector<64x8xbf16>
    %30 = vector.extract_strided_slice %21 {offsets = [1, 1, 0], sizes = [8, 8, 8], strides = [1, 1, 1]} : vector<10x10x8xbf16> to vector<8x8x8xbf16>
    %31 = vector.shape_cast %30 : vector<8x8x8xbf16> to vector<64x8xbf16>
    %32 = vector.extract_strided_slice %21 {offsets = [1, 2, 0], sizes = [8, 8, 8], strides = [1, 1, 1]} : vector<10x10x8xbf16> to vector<8x8x8xbf16>
    %33 = vector.shape_cast %32 : vector<8x8x8xbf16> to vector<64x8xbf16>
    %34 = vector.extract_strided_slice %21 {offsets = [2, 0, 0], sizes = [8, 8, 8], strides = [1, 1, 1]} : vector<10x10x8xbf16> to vector<8x8x8xbf16>
    %35 = vector.shape_cast %34 : vector<8x8x8xbf16> to vector<64x8xbf16>
    %36 = vector.extract_strided_slice %21 {offsets = [2, 1, 0], sizes = [8, 8, 8], strides = [1, 1, 1]} : vector<10x10x8xbf16> to vector<8x8x8xbf16>
    %37 = vector.shape_cast %36 : vector<8x8x8xbf16> to vector<64x8xbf16>
    %38 = vector.extract_strided_slice %21 {offsets = [2, 2, 0], sizes = [8, 8, 8], strides = [1, 1, 1]} : vector<10x10x8xbf16> to vector<8x8x8xbf16>
    %39 = vector.shape_cast %38 : vector<8x8x8xbf16> to vector<64x8xbf16>
    %c0_9 = arith.constant 0 : index
    %c0_10 = arith.constant 0 : index
    %c0_11 = arith.constant 0 : index
    %c0_12 = arith.constant 0 : index
    %c0_13 = arith.constant 0 : index
    %40 = vector.load %arg4[%c0_9, %c0_10, %c0_11, %c0_12, %c0_13] : memref<1x1x10x10x8xbf16, #tpu.memory_space<vmem>>, vector<1x1x10x10x8xbf16>
    %41 = vector.shape_cast %40 : vector<1x1x10x10x8xbf16> to vector<10x10x8xbf16>
    %42 = vector.extract_strided_slice %41 {offsets = [0, 0, 0], sizes = [8, 8, 8], strides = [1, 1, 1]} : vector<10x10x8xbf16> to vector<8x8x8xbf16>
    %43 = vector.shape_cast %42 : vector<8x8x8xbf16> to vector<64x8xbf16>
    %44 = vector.extract_strided_slice %41 {offsets = [0, 1, 0], sizes = [8, 8, 8], strides = [1, 1, 1]} : vector<10x10x8xbf16> to vector<8x8x8xbf16>
    %45 = vector.shape_cast %44 : vector<8x8x8xbf16> to vector<64x8xbf16>
    %46 = vector.extract_strided_slice %41 {offsets = [0, 2, 0], sizes = [8, 8, 8], strides = [1, 1, 1]} : vector<10x10x8xbf16> to vector<8x8x8xbf16>
    %47 = vector.shape_cast %46 : vector<8x8x8xbf16> to vector<64x8xbf16>
    %48 = vector.extract_strided_slice %41 {offsets = [1, 0, 0], sizes = [8, 8, 8], strides = [1, 1, 1]} : vector<10x10x8xbf16> to vector<8x8x8xbf16>
    %49 = vector.shape_cast %48 : vector<8x8x8xbf16> to vector<64x8xbf16>
    %50 = vector.extract_strided_slice %41 {offsets = [1, 1, 0], sizes = [8, 8, 8], strides = [1, 1, 1]} : vector<10x10x8xbf16> to vector<8x8x8xbf16>
    %51 = vector.shape_cast %50 : vector<8x8x8xbf16> to vector<64x8xbf16>
    %52 = vector.extract_strided_slice %41 {offsets = [1, 2, 0], sizes = [8, 8, 8], strides = [1, 1, 1]} : vector<10x10x8xbf16> to vector<8x8x8xbf16>
    %53 = vector.shape_cast %52 : vector<8x8x8xbf16> to vector<64x8xbf16>
    %54 = vector.extract_strided_slice %41 {offsets = [2, 0, 0], sizes = [8, 8, 8], strides = [1, 1, 1]} : vector<10x10x8xbf16> to vector<8x8x8xbf16>
    %55 = vector.shape_cast %54 : vector<8x8x8xbf16> to vector<64x8xbf16>
    %56 = vector.extract_strided_slice %41 {offsets = [2, 1, 0], sizes = [8, 8, 8], strides = [1, 1, 1]} : vector<10x10x8xbf16> to vector<8x8x8xbf16>
    %57 = vector.shape_cast %56 : vector<8x8x8xbf16> to vector<64x8xbf16>
    %58 = vector.extract_strided_slice %41 {offsets = [2, 2, 0], sizes = [8, 8, 8], strides = [1, 1, 1]} : vector<10x10x8xbf16> to vector<8x8x8xbf16>
    %59 = vector.shape_cast %58 : vector<8x8x8xbf16> to vector<64x8xbf16>
    %60 = tpu.concatenate %3, %5, %7, %9, %11, %13, %15, %17, %19, %23, %25, %27, %29, %31, %33, %35 in 1 : vector<64x8xbf16>, vector<64x8xbf16>, vector<64x8xbf16>, vector<64x8xbf16>, vector<64x8xbf16>, vector<64x8xbf16>, vector<64x8xbf16>, vector<64x8xbf16>, vector<64x8xbf16>, vector<64x8xbf16>, vector<64x8xbf16>, vector<64x8xbf16>, vector<64x8xbf16>, vector<64x8xbf16>, vector<64x8xbf16>, vector<64x8xbf16> -> vector<64x128xbf16>
    %61 = tpu.concatenate %37, %39, %43, %45, %47, %49, %51, %53, %55, %57, %59 in 1 : vector<64x8xbf16>, vector<64x8xbf16>, vector<64x8xbf16>, vector<64x8xbf16>, vector<64x8xbf16>, vector<64x8xbf16>, vector<64x8xbf16>, vector<64x8xbf16>, vector<64x8xbf16>, vector<64x8xbf16>, vector<64x8xbf16> -> vector<64x88xbf16>
    %62 = tpu.concatenate %60, %61 in 1 : vector<64x128xbf16>, vector<64x88xbf16> -> vector<64x216xbf16>
    %c0_14 = arith.constant 0 : index
    %c0_15 = arith.constant 0 : index
    %63 = vector.load %arg5[%c0_14, %c0_15] : memref<216x128xbf16, #tpu.memory_space<vmem>>, vector<216x128xbf16>
    %cst = arith.constant dense<0.000000e+00> : vector<64x128xf32>
    %64 = tpu.matmul %62, %63, %cst {dimension_numbers = #tpu.dot_dimension_numbers<[1], [0], [0], [1], [0, 0, 1, 1], [], []>} : vector<64x216xbf16>, vector<216x128xbf16>, vector<64x128xf32> -> vector<64x128xf32>
    %c0_16 = arith.constant 0 : index
    %c0_17 = arith.constant 0 : index
    %65 = vector.load %arg6[%c0_16, %c0_17] : memref<1x128xf32, #tpu.memory_space<vmem>>, vector<1x128xf32>
    %66 = vector.broadcast %65 : vector<1x128xf32> to vector<64x128xf32>
    %67 = arith.mulf %64, %66 : vector<64x128xf32>
    %c0_18 = arith.constant 0 : index
    %c0_19 = arith.constant 0 : index
    %68 = vector.load %arg7[%c0_18, %c0_19] : memref<1x128xf32, #tpu.memory_space<vmem>>, vector<1x128xf32>
    %69 = vector.broadcast %68 : vector<1x128xf32> to vector<64x128xf32>
    %70 = arith.addf %67, %69 : vector<64x128xf32>
    %cst_20 = arith.constant 0.000000e+00 : f32
    %71 = vector.broadcast %cst_20 : f32 to vector<64x128xf32>
    %72 = arith.maximumf %70, %71 : vector<64x128xf32>
    %c0_21 = arith.constant 0 : index
    %c0_22 = arith.constant 0 : index
    %c0_23 = arith.constant 0 : index
    %c0_24 = arith.constant 0 : index
    %73 = vector.load %arg8[%c0_21, %c0_22, %c0_23, %c0_24] : memref<1x1x64x128xf32, #tpu.memory_space<vmem>>, vector<1x1x64x128xf32>
    %74 = vector.shape_cast %73 : vector<1x1x64x128xf32> to vector<64x128xf32>
    %75 = vector.shape_cast %72 : vector<64x128xf32> to vector<1x1x64x128xf32>
    tpu.vector_store %arg8[%c0_21, %c0_22, %c0_23, %c0_24], %75 {strides = array<i32>} : memref<1x1x64x128xf32, #tpu.memory_space<vmem>>, vector<1x1x64x128xf32>,
    return
  }
  func.func @transform_0(%arg0: i32, %arg1: i32) -> (i32, i32, i32, i32, i32) {
    %c0_i32 = arith.constant 0 : i32
    %0 = arith.addi %arg1, %c0_i32 : i32
    %c0_i32_0 = arith.constant 0 : i32
    %c0_i32_1 = arith.constant 0 : i32
    %c0_i32_2 = arith.constant 0 : i32
    %c0_i32_3 = arith.constant 0 : i32
    return %arg0, %0, %c0_i32_0, %c0_i32_1, %c0_i32_2 : i32, i32, i32, i32, i32
  }
  func.func @transform_1(%arg0: i32, %arg1: i32) -> (i32, i32, i32, i32, i32) {
    %c1_i32 = arith.constant 1 : i32
    %0 = arith.addi %arg1, %c1_i32 : i32
    %c0_i32 = arith.constant 0 : i32
    %c0_i32_0 = arith.constant 0 : i32
    %c0_i32_1 = arith.constant 0 : i32
    %c0_i32_2 = arith.constant 0 : i32
    return %arg0, %0, %c0_i32, %c0_i32_0, %c0_i32_1 : i32, i32, i32, i32, i32
  }
  func.func @transform_2(%arg0: i32, %arg1: i32) -> (i32, i32, i32, i32, i32) {
    %c2_i32 = arith.constant 2 : i32
    %0 = arith.addi %arg1, %c2_i32 : i32
    %c0_i32 = arith.constant 0 : i32
    %c0_i32_0 = arith.constant 0 : i32
    %c0_i32_1 = arith.constant 0 : i32
    %c0_i32_2 = arith.constant 0 : i32
    return %arg0, %0, %c0_i32, %c0_i32_0, %c0_i32_1 : i32, i32, i32, i32, i32
  }
  func.func @transform_3(%arg0: i32, %arg1: i32) -> (i32, i32) {
    %c0_i32 = arith.constant 0 : i32
    %c0_i32_0 = arith.constant 0 : i32
    %c0_i32_1 = arith.constant 0 : i32
    return %c0_i32, %c0_i32_0 : i32, i32
  }
  func.func @transform_4(%arg0: i32, %arg1: i32) -> (i32, i32) {
    %c0_i32 = arith.constant 0 : i32
    %c0_i32_0 = arith.constant 0 : i32
    %c0_i32_1 = arith.constant 0 : i32
    return %c0_i32, %c0_i32_0 : i32, i32
  }
  func.func @transform_5(%arg0: i32, %arg1: i32) -> (i32, i32) {
    %c0_i32 = arith.constant 0 : i32
    %c0_i32_0 = arith.constant 0 : i32
    %c0_i32_1 = arith.constant 0 : i32
    return %c0_i32, %c0_i32_0 : i32, i32
  }
  func.func @transform_6(%arg0: i32, %arg1: i32) -> (i32, i32, i32, i32) {
    %c0_i32 = arith.constant 0 : i32
    %c0_i32_0 = arith.constant 0 : i32
    %c0_i32_1 = arith.constant 0 : i32
    return %arg0, %arg1, %c0_i32, %c0_i32_0 : i32, i32, i32, i32
  }
}

</mosaic_0001>

<llo_original>
// kernel: tpu_custom_call.1
$region0: #{tpu_custom_call.1}
  #allocation0 [shape = 'u32[]', space=smem, size = 0x4, offset = 0x4, fixed_abs, tag = 'smem constant byte address 0x4 - core index']
  #allocation1 [shape = 'u32[72,128]{1,0:T(1,128)}', space=vmem, size = 0x9000, scoped, tag = 'internal scratch']
  %s0 = inlined_call_operand.vmem [shape: bf16[2,10,10,10,8], index: 0, kind: input, shape index: {}]
  %s1 = inlined_call_operand.vmem [shape: bf16[2,10,10,10,8], index: 1, kind: input, shape index: {}]
  %s2 = inlined_call_operand.vmem [shape: bf16[2,10,10,10,8], index: 2, kind: input, shape index: {}]
  %s3 = inlined_call_operand.vmem [shape: bf16[216,128], index: 3, kind: input, shape index: {}]
  %s4 = inlined_call_operand.vmem [shape: f32[1,128], index: 4, kind: input, shape index: {}]
  %s5 = inlined_call_operand.vmem [shape: f32[1,128], index: 5, kind: input, shape index: {}]
  %s6 = inlined_call_operand.hbm [shape: f32[2,8,64,128], index: 6, kind: output, shape index: {}]
  %s7 = sld [smem:[#allocation0]]
  $region57: #{tpu_custom_call.1} parent=0
    _
  %s9 = ssub.s32 1, %s7
  %s10 = scalar_select 0, %s9, %s7
  $region1: #{tpu_custom_call.1} parent=0
    #allocation2 [shape = 'u8[65536]{0}', space=vmem, size = 0x10000, scoped, tag = 'output window, operand 0']
    #allocation3 [shape = 's32[2]{0}', space=sflag, size = 0x8, scoped, tag = 'scoped memory for tpu_custom_call.1']
    %11 = vsyncpa [#allocation3], 0
    %s12 = scalar_lea.sflag [#allocation3], 1
    %13 = vsyncpa %s12, 0
    loop: start=0, step=1, limit=18
    $region2: #{tpu_custom_call.1} parent=1 // loop_pre_header
      _
    $region3: #{tpu_custom_call.1} parent=1 // loop_header
      %s15 = sphi 0, %s19
      %p16 = scmp.ge.s32.totalorder %s15, 18
      %s22 = sphi 0, %s34
      %s23 = sphi 0, %s30
      %s24 = sphi 0, %s22
      %s25 = sphi 0, %s23
      %s26 = sphi 0, %s24
      %s27 = sphi 0, %s25
      %s39 = sphi 0, %s41
      %s42 = sphi 0, %s39
      %s43 = sphi 0, %s42
      %s59 = sphi 0, %s43
      %s69 = sphi 0, %s71
      %s72 = sphi 0, %s69
      %s73 = sphi 0, %s72
      %s89 = sphi 0, %s73
      %s99 = sphi 0, %s101
      %s102 = sphi 0, %s99
      %s103 = sphi 0, %s102
      %s119 = sphi 0, %s103
      %s123 = sphi 0, %s123
      %s125 = sphi 0, %s123
      %s126 = sphi 0, %s125
      %s140 = sphi 0, %s126
      %s144 = sphi 0, %s144
      %s146 = sphi 0, %s144
      %s147 = sphi 0, %s146
      %s161 = sphi 0, %s147
      %s165 = sphi 0, %s165
      %s167 = sphi 0, %s165
      %s168 = sphi 0, %s167
      %s182 = sphi 0, %s168
      %s190 = sphi 0, %s192
      %s193 = sphi 0, %s190
      %s194 = sphi 0, %s193
      %s210 = sphi 0, %s194
    $region4: #{tpu_custom_call.1} parent=1 // loop_header_branch
      %18 = sbr.rel (%p16) target = $region8
    $region5: #{tpu_custom_call.1} parent=1 // loop_body
      %s20 = ssub.s32 %s15, 1
      %s21 = ssub.s32 %s15, 2
      %s28 = sadd.s32 1, %s23
      %p29 = scmp.ge.s32.totalorder %s28, 8
      %s30 = scalar_select %p29, 0, %s28
      %s31 = sadd.s32 1, %s22
      %s32 = scalar_select %p29, %s31, %s22
      %p33 = scmp.ge.s32.totalorder %s32, 2
      %s34 = scalar_select %p33, 0, %s32
      %s35 = ssub.s32 %s22, %s34
      %s36 = ssub.s32 %s23, %s30
      %s37 = sor.u32 %s35, %s36
      %p38 = scmp.eq.s32.totalorder %s37, 0
      %s40 = sadd.s32 %s39, 1
      %s41 = scalar_select %p38, %s39, %s40
      %p44 = pneg %p38
      %p45 = scmp.eq.s32.totalorder %s15, 15
      %p46 = por %p44, %p45
      %p47 = scmp.ne.s32.totalorder %s39, %s42
      %p48 = scmp.eq.s32.totalorder %s15, 0
      %p49 = por %p47, %p48
      %p50 = scmp.ne.s32.totalorder %s39, %s42
      %p51 = scmp.eq.s32.totalorder %s20, 15
      %p52 = por %p50, %p51
      %p53 = scmp.ne.s32.totalorder %s42, %s43
      %p54 = scmp.eq.s32.totalorder %s20, 0
      %p55 = por %p53, %p54
      %p56 = scmp.ne.s32.totalorder %s42, %s43
      %p57 = scmp.eq.s32.totalorder %s21, 15
      %p58 = por %p56, %p57
      %p60 = scmp.ne.s32.totalorder %s43, %s59
      %p61 = scmp.eq.s32.totalorder %s21, 0
      %p62 = por %p60, %p61
      %s63 = sadd.s32 %s23, 1
      %s64 = sadd.s32 %s30, 1
      %s65 = ssub.s32 %s22, %s34
      %s66 = ssub.s32 %s63, %s64
      %s67 = sor.u32 %s65, %s66
      %p68 = scmp.eq.s32.totalorder %s67, 0
      %s70 = sadd.s32 %s69, 1
      %s71 = scalar_select %p68, %s69, %s70
      %p74 = pneg %p68
      %p75 = scmp.eq.s32.totalorder %s15, 15
      %p76 = por %p74, %p75
      %p77 = scmp.ne.s32.totalorder %s69, %s72
      %p78 = scmp.eq.s32.totalorder %s15, 0
      %p79 = por %p77, %p78
      %p80 = scmp.ne.s32.totalorder %s69, %s72
      %p81 = scmp.eq.s32.totalorder %s20, 15
      %p82 = por %p80, %p81
      %p83 = scmp.ne.s32.totalorder %s72, %s73
      %p84 = scmp.eq.s32.totalorder %s20, 0
      %p85 = por %p83, %p84
      %p86 = scmp.ne.s32.totalorder %s72, %s73
      %p87 = scmp.eq.s32.totalorder %s21, 15
      %p88 = por %p86, %p87
      %p90 = scmp.ne.s32.totalorder %s73, %s89
      %p91 = scmp.eq.s32.totalorder %s21, 0
      %p92 = por %p90, %p91
      %s93 = sadd.s32 %s23, 2
      %s94 = sadd.s32 %s30, 2
      %s95 = ssub.s32 %s22, %s34
      %s96 = ssub.s32 %s93, %s94
      %s97 = sor.u32 %s95, %s96
      %p98 = scmp.eq.s32.totalorder %s97, 0
      %s100 = sadd.s32 %s99, 1
      %s101 = scalar_select %p98, %s99, %s100
      %p104 = pneg %p98
      %p105 = scmp.eq.s32.totalorder %s15, 15
      %p106 = por %p104, %p105
      %p107 = scmp.ne.s32.totalorder %s99, %s102
      %p108 = scmp.eq.s32.totalorder %s15, 0
      %p109 = por %p107, %p108
      %p110 = scmp.ne.s32.totalorder %s99, %s102
      %p111 = scmp.eq.s32.totalorder %s20, 15
      %p112 = por %p110, %p111
      %p113 = scmp.ne.s32.totalorder %s102, %s103
      %p114 = scmp.eq.s32.totalorder %s20, 0
      %p115 = por %p113, %p114
      %p116 = scmp.ne.s32.totalorder %s102, %s103
      %p117 = scmp.eq.s32.totalorder %s21, 15
      %p118 = por %p116, %p117
      %p120 = scmp.ne.s32.totalorder %s103, %s119
      %p121 = scmp.eq.s32.totalorder %s21, 0
      %p122 = por %p120, %p121
      %s124 = sadd.s32 %s123, 1
      %p127 = scmp.eq.s32.totalorder %s15, 15
      %p128 = scmp.ne.s32.totalorder %s123, %s125
      %p129 = scmp.eq.s32.totalorder %s15, 0
      %p130 = por %p128, %p129
      %p131 = scmp.ne.s32.totalorder %s123, %s125
      %p132 = scmp.eq.s32.totalorder %s20, 15
      %p133 = por %p131, %p132
      %p134 = scmp.ne.s32.totalorder %s125, %s126
      %p135 = scmp.eq.s32.totalorder %s20, 0
      %p136 = por %p134, %p135
      %p137 = scmp.ne.s32.totalorder %s125, %s126
      %p138 = scmp.eq.s32.totalorder %s21, 15
      %p139 = por %p137, %p138
      %p141 = scmp.ne.s32.totalorder %s126, %s140
      %p142 = scmp.eq.s32.totalorder %s21, 0
      %p143 = por %p141, %p142
      %s145 = sadd.s32 %s144, 1
      %p148 = scmp.eq.s32.totalorder %s15, 15
      %p149 = scmp.ne.s32.totalorder %s144, %s146
      %p150 = scmp.eq.s32.totalorder %s15, 0
      %p151 = por %p149, %p150
      %p152 = scmp.ne.s32.totalorder %s144, %s146
      %p153 = scmp.eq.s32.totalorder %s20, 15
      %p154 = por %p152, %p153
      %p155 = scmp.ne.s32.totalorder %s146, %s147
      %p156 = scmp.eq.s32.totalorder %s20, 0
      %p157 = por %p155, %p156
      %p158 = scmp.ne.s32.totalorder %s146, %s147
      %p159 = scmp.eq.s32.totalorder %s21, 15
      %p160 = por %p158, %p159
      %p162 = scmp.ne.s32.totalorder %s147, %s161
      %p163 = scmp.eq.s32.totalorder %s21, 0
      %p164 = por %p162, %p163
      %s166 = sadd.s32 %s165, 1
      %p169 = scmp.eq.s32.totalorder %s15, 15
      %p170 = scmp.ne.s32.totalorder %s165, %s167
      %p171 = scmp.eq.s32.totalorder %s15, 0
      %p172 = por %p170, %p171
      %p173 = scmp.ne.s32.totalorder %s165, %s167
      %p174 = scmp.eq.s32.totalorder %s20, 15
      %p175 = por %p173, %p174
      %p176 = scmp.ne.s32.totalorder %s167, %s168
      %p177 = scmp.eq.s32.totalorder %s20, 0
      %p178 = por %p176, %p177
      %p179 = scmp.ne.s32.totalorder %s167, %s168
      %p180 = scmp.eq.s32.totalorder %s21, 15
      %p181 = por %p179, %p180
      %p183 = scmp.ne.s32.totalorder %s168, %s182
      %p184 = scmp.eq.s32.totalorder %s21, 0
      %p185 = por %p183, %p184
      %s186 = ssub.s32 %s22, %s34
      %s187 = ssub.s32 %s23, %s30
      %s188 = sor.u32 %s186, %s187
      %p189 = scmp.eq.s32.totalorder %s188, 0
      %s191 = sadd.s32 %s190, 1
      %s192 = scalar_select %p189, %s190, %s191
      %p195 = pneg %p189
      %p196 = scmp.eq.s32.totalorder %s15, 15
      %p197 = por %p195, %p196
      %p198 = scmp.ne.s32.totalorder %s190, %s193
      %p199 = scmp.eq.s32.totalorder %s15, 0
      %p200 = por %p198, %p199
      %p201 = scmp.ne.s32.totalorder %s190, %s193
      %p202 = scmp.eq.s32.totalorder %s20, 15
      %p203 = por %p201, %p202
      %p204 = scmp.ne.s32.totalorder %s193, %s194
      %p205 = scmp.eq.s32.totalorder %s20, 0
      %p206 = por %p204, %p205
      %p207 = scmp.ne.s32.totalorder %s193, %s194
      %p208 = scmp.eq.s32.totalorder %s21, 15
      %p209 = por %p207, %p208
      %p211 = scmp.ne.s32.totalorder %s194, %s210
      %p212 = scmp.eq.s32.totalorder %s21, 0
      %p213 = por %p211, %p212
      %p214 = scmp.le.s32.totalorder 1, %s15
      %p215 = scmp.lt.s32.totalorder %s15, 17
      %p216 = pnand %p214, %p215
      %p217 = pneg %p216
      // Predicated region
      $region9: #{tpu_custom_call.1} parent=5 // pred_check
        _
      $region10: #{tpu_custom_call.1} parent=5 // pred_check_branch
        %219 = sbr.rel (%p216) target = $region12
      $region11: #{tpu_custom_call.1} parent=5 // pred_region
        %s220 = ssub.s32 %s15, 1
        // Predicated region
        $region13: #{tpu_custom_call.1} parent=11 // pred_check
          %p221 = pneg %p136
        $region14: #{tpu_custom_call.1} parent=11 // pred_check_branch
          %223 = sbr.rel (%p221) target = $region16
        $region15: #{tpu_custom_call.1} parent=11 // pred_region
          _
        $region16: #{tpu_custom_call.1} parent=11 // pred_fallthru
          _
        // Predicated region
        $region17: #{tpu_custom_call.1} parent=11 // pred_check
          %p224 = pneg %p157
        $region18: #{tpu_custom_call.1} parent=11 // pred_check_branch
          %226 = sbr.rel (%p224) target = $region20
        $region19: #{tpu_custom_call.1} parent=11 // pred_region
          _
        $region20: #{tpu_custom_call.1} parent=11 // pred_fallthru
          _
        // Predicated region
        $region21: #{tpu_custom_call.1} parent=11 // pred_check
          %p227 = pneg %p178
        $region22: #{tpu_custom_call.1} parent=11 // pred_check_branch
          %229 = sbr.rel (%p227) target = $region24
        $region23: #{tpu_custom_call.1} parent=11 // pred_region
          _
        $region24: #{tpu_custom_call.1} parent=11 // pred_fallthru
          _
      $region12: #{tpu_custom_call.1} parent=5 // pred_fallthru
        _
      %p230 = scmp.lt.s32.totalorder %s15, 16
      // Predicated region
      $region25: #{tpu_custom_call.1} parent=5 // pred_check
        %p231 = pneg %p230
      $region26: #{tpu_custom_call.1} parent=5 // pred_check_branch
        %233 = sbr.rel (%p231) target = $region28
      $region27: #{tpu_custom_call.1} parent=5 // pred_region
        // Predicated region
        $region29: #{tpu_custom_call.1} parent=27 // pred_check
          %p234 = pneg %p49
        $region30: #{tpu_custom_call.1} parent=27 // pred_check_branch
          %236 = sbr.rel (%p234) target = $region32
        $region31: #{tpu_custom_call.1} parent=27 // pred_region
          %p237 = scmp.lt.s32.totalorder %s22, 1
          %s238 = scalar_select %p237, %s22, 1
          %p239 = scmp.lt.s32.totalorder %s23, 9
          %s240 = scalar_select %p239, %s23, 9
          %s241 = smul.addr %s240, 20
          %s242 = smul.addr %s238, 200
          %s243 = sadd.s32 %s241, %s242
          %s244 = smul.addr %s243, 4
          %s245 = scalar_lea.vmem %s0, %s244
        $region32: #{tpu_custom_call.1} parent=27 // pred_fallthru
          _
        // Predicated region
        $region33: #{tpu_custom_call.1} parent=27 // pred_check
          %p246 = pneg %p79
        $region34: #{tpu_custom_call.1} parent=27 // pred_check_branch
          %248 = sbr.rel (%p246) target = $region36
        $region35: #{tpu_custom_call.1} parent=27 // pred_region
          %s249 = sadd.s32 %s23, 1
          %p250 = scmp.lt.s32.totalorder %s22, 1
          %s251 = scalar_select %p250, %s22, 1
          %p252 = scmp.lt.s32.totalorder %s249, 9
          %s253 = scalar_select %p252, %s249, 9
          %s254 = smul.addr %s253, 20
          %s255 = smul.addr %s251, 200
          %s256 = sadd.s32 %s254, %s255
          %s257 = smul.addr %s256, 4
          %s258 = scalar_lea.vmem %s1, %s257
          %s259 = sadd.s32 %s23, 1
        $region36: #{tpu_custom_call.1} parent=27 // pred_fallthru
          _
        // Predicated region
        $region37: #{tpu_custom_call.1} parent=27 // pred_check
          %p260 = pneg %p109
        $region38: #{tpu_custom_call.1} parent=27 // pred_check_branch
          %262 = sbr.rel (%p260) target = $region40
        $region39: #{tpu_custom_call.1} parent=27 // pred_region
          %s263 = sadd.s32 %s23, 2
          %p264 = scmp.lt.s32.totalorder %s22, 1
          %s265 = scalar_select %p264, %s22, 1
          %p266 = scmp.lt.s32.totalorder %s263, 9
          %s267 = scalar_select %p266, %s263, 9
          %s268 = smul.addr %s267, 20
          %s269 = smul.addr %s265, 200
          %s270 = sadd.s32 %s268, %s269
          %s271 = smul.addr %s270, 4
          %s272 = scalar_lea.vmem %s2, %s271
          %s273 = sadd.s32 %s23, 2
        $region40: #{tpu_custom_call.1} parent=27 // pred_fallthru
          _
      $region28: #{tpu_custom_call.1} parent=5 // pred_fallthru
        _
      %p274 = scmp.le.s32.totalorder 1, %s15
      %p275 = scmp.lt.s32.totalorder %s15, 17
      %p276 = pnand %p274, %p275
      %p277 = pneg %p276
      // Predicated region
      $region41: #{tpu_custom_call.1} parent=5 // pred_check
        _
      $region42: #{tpu_custom_call.1} parent=5 // pred_check_branch
        %279 = sbr.rel (%p276) target = $region44
      $region43: #{tpu_custom_call.1} parent=5 // pred_region
        %s280 = ssub.s32 %s15, 1
        %p281 = scmp.lt.s32.totalorder %s24, 1
        %s282 = scalar_select %p281, %s24, 1
        %p283 = scmp.lt.s32.totalorder %s25, 9
        %s284 = scalar_select %p283, %s25, 9
        %s285 = smul.addr %s284, 20
        %s286 = smul.addr %s282, 200
        %s287 = sadd.s32 %s285, %s286
        %s288 = smul.addr %s287, 4
        %s289 = scalar_lea.vmem %s0, %s288
        %p290 = pneg %p55
        %p291 = pneg %p52
        %s292 = sadd.s32 %s25, 1
        %p293 = scmp.lt.s32.totalorder %s24, 1
        %s294 = scalar_select %p293, %s24, 1
        %p295 = scmp.lt.s32.totalorder %s292, 9
        %s296 = scalar_select %p295, %s292, 9
        %s297 = smul.addr %s296, 20
        %s298 = smul.addr %s294, 200
        %s299 = sadd.s32 %s297, %s298
        %s300 = smul.addr %s299, 4
        %s301 = scalar_lea.vmem %s1, %s300
        %p302 = pneg %p85
        %p303 = pneg %p82
        %s304 = sadd.s32 %s25, 2
        %p305 = scmp.lt.s32.totalorder %s24, 1
        %s306 = scalar_select %p305, %s24, 1
        %p307 = scmp.lt.s32.totalorder %s304, 9
        %s308 = scalar_select %p307, %s304, 9
        %s309 = smul.addr %s308, 20
        %s310 = smul.addr %s306, 200
        %s311 = sadd.s32 %s309, %s310
        %s312 = smul.addr %s311, 4
        %s313 = scalar_lea.vmem %s2, %s312
        %p314 = pneg %p115
        %p315 = pneg %p112
        %p316 = pneg %p136
        %p317 = pneg %p133
        %p318 = pneg %p157
        %p319 = pneg %p154
        %p320 = pneg %p178
        %p321 = pneg %p175
        %p322 = pneg %p206
        %p323 = pneg %p203
        %s324 = sand.u32 %s193, 1
        %s325 = scalar_lea.sflag [#allocation3], %s324
        %s326 = sand.u32 %s193, 1
        %s327 = smul.addr %s326, 64
        %s328 = scalar_lea.vmem [#allocation2], %s327
        %p329 = scmp.lt.s32.totalorder %s24, 1
        %s330 = scalar_select %p329, %s24, 1
        %p331 = scmp.lt.s32.totalorder %s25, 9
        %s332 = scalar_select %p331, %s25, 9
        %s333 = smul.addr %s332, 20
        %s334 = smul.addr %s330, 200
        %s335 = sadd.s32 %s333, %s334
        %s336 = smul.addr %s335, 4
        %s337 = scalar_lea.vmem %s0, %s336
        %s338 = sadd.s32 %s25, 1
        %p339 = scmp.lt.s32.totalorder %s24, 1
        %s340 = scalar_select %p339, %s24, 1
        %p341 = scmp.lt.s32.totalorder %s338, 9
        %s342 = scalar_select %p341, %s338, 9
        %s343 = smul.addr %s342, 20
        %s344 = smul.addr %s340, 200
        %s345 = sadd.s32 %s343, %s344
        %s346 = smul.addr %s345, 4
        %s347 = scalar_lea.vmem %s1, %s346
        %s348 = sadd.s32 %s25, 1
        %s349 = sadd.s32 %s25, 2
        %p350 = scmp.lt.s32.totalorder %s24, 1
        %s351 = scalar_select %p350, %s24, 1
        %p352 = scmp.lt.s32.totalorder %s349, 9
        %s353 = scalar_select %p352, %s349, 9
        %s354 = smul.addr %s353, 20
        %s355 = smul.addr %s351, 200
        %s356 = sadd.s32 %s354, %s355
        %s357 = smul.addr %s356, 4
        %s358 = scalar_lea.vmem %s2, %s357
        %s359 = sadd.s32 %s25, 2
        %v361 = vld [vmem:[%s337] sm:$0xf]
        %v362 = vld [vmem:[%s337 + $0x4] sm:$0x1]
        %v363 = vld [vmem:[%s337 + $0x8] sm:$0xf]
        %v364 = vld [vmem:[%s337 + $0xc] sm:$0x1]
        %v365 = vld [vmem:[%s337 + $0x10] sm:$0xf]
        %v366 = vld [vmem:[%s337 + $0x14] sm:$0x1]
        %v367 = vld [vmem:[%s337 + $0x18] sm:$0xf]
        %v368 = vld [vmem:[%s337 + $0x1c] sm:$0x1]
        %v369 = vld [vmem:[%s337 + $0x20] sm:$0xf]
        %v370 = vld [vmem:[%s337 + $0x24] sm:$0x1]
        %v371 = vld [vmem:[%s337 + $0x28] sm:$0xf]
        %v372 = vld [vmem:[%s337 + $0x2c] sm:$0x1]
        %v373 = vld [vmem:[%s337 + $0x30] sm:$0xf]
        %v374 = vld [vmem:[%s337 + $0x34] sm:$0x1]
        %v375 = vld [vmem:[%s337 + $0x38] sm:$0xf]
        %v376 = vld [vmem:[%s337 + $0x3c] sm:$0x1]
        %v377 = vld [vmem:[%s337 + $0x40] sm:$0xf]
        %v378 = vld [vmem:[%s337 + $0x44] sm:$0x1]
        %v379 = vld [vmem:[%s337 + $0x48] sm:$0xf]
        %v380 = vld [vmem:[%s337 + $0x4c] sm:$0x1]
        %vm381 = vsmask.f32 3328
        %vm382 = vsmask.f32 7440
        %vm383 = vmor %vm381, %vm382
        %v385 = vshrl.u32 %v361, 16
        %v387 = vrot.slane %v385, 4
        %v388 = vshll.u32 %v361, 16
        %v390 = vrot.slane %v388, 5
        %v391 = vor.u32 %v387, %v390
        %v392 = vrot.slane %v391, 4
        %v394 = vshll.u32 %v362, 16
        %v396 = vrot.slane %v394, 5
        %v397 = vsel %vm383, %v392, %v396
        %v399 = vshrl.u32 %v363, 16
        %v401 = vrot.slane %v399, 4
        %v402 = vshll.u32 %v363, 16
        %v404 = vrot.slane %v402, 5
        %v405 = vor.u32 %v401, %v404
        %v406 = vrot.slane %v405, 4
        %v408 = vshll.u32 %v364, 16
        %v410 = vrot.slane %v408, 5
        %v411 = vsel %vm383, %v406, %v410
        %v413 = vshrl.u32 %v365, 16
        %v415 = vrot.slane %v413, 4
        %v416 = vshll.u32 %v365, 16
        %v418 = vrot.slane %v416, 5
        %v419 = vor.u32 %v415, %v418
        %v420 = vrot.slane %v419, 4
        %v422 = vshll.u32 %v366, 16
        %v424 = vrot.slane %v422, 5
        %v425 = vsel %vm383, %v420, %v424
        %v427 = vshrl.u32 %v367, 16
        %v429 = vrot.slane %v427, 4
        %v430 = vshll.u32 %v367, 16
        %v432 = vrot.slane %v430, 5
        %v433 = vor.u32 %v429, %v432
        %v434 = vrot.slane %v433, 4
        %v436 = vshll.u32 %v368, 16
        %v438 = vrot.slane %v436, 5
        %v439 = vsel %vm383, %v434, %v438
        %v441 = vshrl.u32 %v369, 16
        %v443 = vrot.slane %v441, 4
        %v444 = vshll.u32 %v369, 16
        %v446 = vrot.slane %v444, 5
        %v447 = vor.u32 %v443, %v446
        %v448 = vrot.slane %v447, 4
        %v450 = vshll.u32 %v370, 16
        %v452 = vrot.slane %v450, 5
        %v453 = vsel %vm383, %v448, %v452
        %v455 = vshrl.u32 %v371, 16
        %v457 = vrot.slane %v455, 4
        %v458 = vshll.u32 %v371, 16
        %v460 = vrot.slane %v458, 5
        %v461 = vor.u32 %v457, %v460
        %v462 = vrot.slane %v461, 4
        %v464 = vshll.u32 %v372, 16
        %v466 = vrot.slane %v464, 5
        %v467 = vsel %vm383, %v462, %v466
        %v469 = vshrl.u32 %v373, 16
        %v471 = vrot.slane %v469, 4
        %v472 = vshll.u32 %v373, 16
        %v474 = vrot.slane %v472, 5
        %v475 = vor.u32 %v471, %v474
        %v476 = vrot.slane %v475, 4
        %v478 = vshll.u32 %v374, 16
        %v480 = vrot.slane %v478, 5
        %v481 = vsel %vm383, %v476, %v480
        %v483 = vshrl.u32 %v375, 16
        %v485 = vrot.slane %v483, 4
        %v486 = vshll.u32 %v375, 16
        %v488 = vrot.slane %v486, 5
        %v489 = vor.u32 %v485, %v488
        %v490 = vrot.slane %v489, 4
        %v492 = vshll.u32 %v376, 16
        %v494 = vrot.slane %v492, 5
        %v495 = vsel %vm383, %v490, %v494
        %vm512 = vcmask 1042432
        %vm513 = vcmask 1046532
        %vm514 = vmor %vm512, %vm513
        %v515 = vrot.slane %v361, 5
        %v516 = vrot.slane %v515, 4
        %v517 = vrot.slane %v362, 5
        %v518 = vsel %vm514, %v516, %v517
        %v519 = vrot.slane %v363, 5
        %v520 = vrot.slane %v519, 4
        %v521 = vrot.slane %v364, 5
        %v522 = vsel %vm514, %v520, %v521
        %v523 = vrot.slane %v365, 5
        %v524 = vrot.slane %v523, 4
        %v525 = vrot.slane %v366, 5
        %v526 = vsel %vm514, %v524, %v525
        %v527 = vrot.slane %v367, 5
        %v528 = vrot.slane %v527, 4
        %v529 = vrot.slane %v368, 5
        %v530 = vsel %vm514, %v528, %v529
        %v531 = vrot.slane %v369, 5
        %v532 = vrot.slane %v531, 4
        %v533 = vrot.slane %v370, 5
        %v534 = vsel %vm514, %v532, %v533
        %v535 = vrot.slane %v371, 5
        %v536 = vrot.slane %v535, 4
        %v537 = vrot.slane %v372, 5
        %v538 = vsel %vm514, %v536, %v537
        %v539 = vrot.slane %v373, 5
        %v540 = vrot.slane %v539, 4
        %v541 = vrot.slane %v374, 5
        %v542 = vsel %vm514, %v540, %v541
        %v543 = vrot.slane %v375, 5
        %v544 = vrot.slane %v543, 4
        %v545 = vrot.slane %v376, 5
        %v546 = vsel %vm514, %v544, %v545
        %v548 = vshrl.u32 %v377, 16
        %v550 = vrot.slane %v548, 4
        %v551 = vshll.u32 %v377, 16
        %v553 = vrot.slane %v551, 5
        %v554 = vor.u32 %v550, %v553
        %v555 = vrot.slane %v554, 4
        %v557 = vshll.u32 %v378, 16
        %v559 = vrot.slane %v557, 5
        %v560 = vsel %vm383, %v555, %v559
        %v563 = vrot.slane %v377, 5
        %v564 = vrot.slane %v563, 4
        %v565 = vrot.slane %v378, 5
        %v566 = vsel %vm514, %v564, %v565
        %v568 = vshrl.u32 %v379, 16
        %v570 = vrot.slane %v568, 4
        %v571 = vshll.u32 %v379, 16
        %v573 = vrot.slane %v571, 5
        %v574 = vor.u32 %v570, %v573
        %v575 = vrot.slane %v574, 4
        %v577 = vshll.u32 %v380, 16
        %v579 = vrot.slane %v577, 5
        %v580 = vsel %vm383, %v575, %v579
        %v583 = vrot.slane %v379, 5
        %v584 = vrot.slane %v583, 4
        %v585 = vrot.slane %v380, 5
        %v586 = vsel %vm514, %v584, %v585
        %v587 = vld [vmem:[%s347] sm:$0xf]
        %v588 = vld [vmem:[%s347 + $0x4] sm:$0x1]
        %v589 = vld [vmem:[%s347 + $0x8] sm:$0xf]
        %v590 = vld [vmem:[%s347 + $0xc] sm:$0x1]
        %v591 = vld [vmem:[%s347 + $0x10] sm:$0xf]
        %v592 = vld [vmem:[%s347 + $0x14] sm:$0x1]
        %v593 = vld [vmem:[%s347 + $0x18] sm:$0xf]
        %v594 = vld [vmem:[%s347 + $0x1c] sm:$0x1]
        %v595 = vld [vmem:[%s347 + $0x20] sm:$0xf]
        %v596 = vld [vmem:[%s347 + $0x24] sm:$0x1]
        %v597 = vld [vmem:[%s347 + $0x28] sm:$0xf]
        %v598 = vld [vmem:[%s347 + $0x2c] sm:$0x1]
        %v599 = vld [vmem:[%s347 + $0x30] sm:$0xf]
        %v600 = vld [vmem:[%s347 + $0x34] sm:$0x1]
        %v601 = vld [vmem:[%s347 + $0x38] sm:$0xf]
        %v602 = vld [vmem:[%s347 + $0x3c] sm:$0x1]
        %v603 = vld [vmem:[%s347 + $0x40] sm:$0xf]
        %v604 = vld [vmem:[%s347 + $0x44] sm:$0x1]
        %v605 = vld [vmem:[%s347 + $0x48] sm:$0xf]
        %v606 = vld [vmem:[%s347 + $0x4c] sm:$0x1]
        %v608 = vshrl.u32 %v587, 16
        %v610 = vrot.slane %v608, 4
        %v611 = vshll.u32 %v587, 16
        %v613 = vrot.slane %v611, 5
        %v614 = vor.u32 %v610, %v613
        %v615 = vrot.slane %v614, 4
        %v617 = vshll.u32 %v588, 16
        %v619 = vrot.slane %v617, 5
        %v620 = vsel %vm383, %v615, %v619
        %v622 = vshrl.u32 %v589, 16
        %v624 = vrot.slane %v622, 4
        %v625 = vshll.u32 %v589, 16
        %v627 = vrot.slane %v625, 5
        %v628 = vor.u32 %v624, %v627
        %v629 = vrot.slane %v628, 4
        %v631 = vshll.u32 %v590, 16
        %v633 = vrot.slane %v631, 5
        %v634 = vsel %vm383, %v629, %v633
        %v636 = vshrl.u32 %v591, 16
        %v638 = vrot.slane %v636, 4
        %v639 = vshll.u32 %v591, 16
        %v641 = vrot.slane %v639, 5
        %v642 = vor.u32 %v638, %v641
        %v643 = vrot.slane %v642, 4
        %v645 = vshll.u32 %v592, 16
        %v647 = vrot.slane %v645, 5
        %v648 = vsel %vm383, %v643, %v647
        %v650 = vshrl.u32 %v593, 16
        %v652 = vrot.slane %v650, 4
        %v653 = vshll.u32 %v593, 16
        %v655 = vrot.slane %v653, 5
        %v656 = vor.u32 %v652, %v655
        %v657 = vrot.slane %v656, 4
        %v659 = vshll.u32 %v594, 16
        %v661 = vrot.slane %v659, 5
        %v662 = vsel %vm383, %v657, %v661
        %v664 = vshrl.u32 %v595, 16
        %v666 = vrot.slane %v664, 4
        %v667 = vshll.u32 %v595, 16
        %v669 = vrot.slane %v667, 5
        %v670 = vor.u32 %v666, %v669
        %v671 = vrot.slane %v670, 4
        %v673 = vshll.u32 %v596, 16
        %v675 = vrot.slane %v673, 5
        %v676 = vsel %vm383, %v671, %v675
        %v678 = vshrl.u32 %v597, 16
        %v680 = vrot.slane %v678, 4
        %v681 = vshll.u32 %v597, 16
        %v683 = vrot.slane %v681, 5
        %v684 = vor.u32 %v680, %v683
        %v685 = vrot.slane %v684, 4
        %v687 = vshll.u32 %v598, 16
        %v689 = vrot.slane %v687, 5
        %v690 = vsel %vm383, %v685, %v689
        %v692 = vshrl.u32 %v599, 16
        %v694 = vrot.slane %v692, 4
        %v695 = vshll.u32 %v599, 16
        %v697 = vrot.slane %v695, 5
        %v698 = vor.u32 %v694, %v697
        %v699 = vrot.slane %v698, 4
        %v701 = vshll.u32 %v600, 16
        %v703 = vrot.slane %v701, 5
        %v704 = vsel %vm383, %v699, %v703
        %v706 = vshrl.u32 %v601, 16
        %v708 = vrot.slane %v706, 4
        %v709 = vshll.u32 %v601, 16
        %v711 = vrot.slane %v709, 5
        %v712 = vor.u32 %v708, %v711
        %v713 = vrot.slane %v712, 4
        %v715 = vshll.u32 %v602, 16
        %v717 = vrot.slane %v715, 5
        %v718 = vsel %vm383, %v713, %v717
        %v735 = vrot.slane %v587, 5
        %v736 = vrot.slane %v735, 4
        %v737 = vrot.slane %v588, 5
        %v738 = vsel %vm514, %v736, %v737
        %v739 = vrot.slane %v589, 5
        %v740 = vrot.slane %v739, 4
        %v741 = vrot.slane %v590, 5
        %v742 = vsel %vm514, %v740, %v741
        %v743 = vrot.slane %v591, 5
        %v744 = vrot.slane %v743, 4
        %v745 = vrot.slane %v592, 5
        %v746 = vsel %vm514, %v744, %v745
        %v747 = vrot.slane %v593, 5
        %v748 = vrot.slane %v747, 4
        %v749 = vrot.slane %v594, 5
        %v750 = vsel %vm514, %v748, %v749
        %v751 = vrot.slane %v595, 5
        %v752 = vrot.slane %v751, 4
        %v753 = vrot.slane %v596, 5
        %v754 = vsel %vm514, %v752, %v753
        %v755 = vrot.slane %v597, 5
        %v756 = vrot.slane %v755, 4
        %v757 = vrot.slane %v598, 5
        %v758 = vsel %vm514, %v756, %v757
        %v759 = vrot.slane %v599, 5
        %v760 = vrot.slane %v759, 4
        %v761 = vrot.slane %v600, 5
        %v762 = vsel %vm514, %v760, %v761
        %v763 = vrot.slane %v601, 5
        %v764 = vrot.slane %v763, 4
        %v765 = vrot.slane %v602, 5
        %v766 = vsel %vm514, %v764, %v765
        %v768 = vshrl.u32 %v603, 16
        %v770 = vrot.slane %v768, 4
        %v771 = vshll.u32 %v603, 16
        %v773 = vrot.slane %v771, 5
        %v774 = vor.u32 %v770, %v773
        %v775 = vrot.slane %v774, 4
        %v777 = vshll.u32 %v604, 16
        %v779 = vrot.slane %v777, 5
        %v780 = vsel %vm383, %v775, %v779
        %v783 = vrot.slane %v603, 5
        %v784 = vrot.slane %v783, 4
        %v785 = vrot.slane %v604, 5
        %v786 = vsel %vm514, %v784, %v785
        %v788 = vshrl.u32 %v605, 16
        %v790 = vrot.slane %v788, 4
        %v791 = vshll.u32 %v605, 16
        %v793 = vrot.slane %v791, 5
        %v794 = vor.u32 %v790, %v793
        %v795 = vrot.slane %v794, 4
        %v797 = vshll.u32 %v606, 16
        %v799 = vrot.slane %v797, 5
        %v800 = vsel %vm383, %v795, %v799
        %v803 = vrot.slane %v605, 5
        %v804 = vrot.slane %v803, 4
        %v805 = vrot.slane %v606, 5
        %v806 = vsel %vm514, %v804, %v805
        %v807 = vld [vmem:[%s358] sm:$0xf]
        %v808 = vld [vmem:[%s358 + $0x4] sm:$0x1]
        %v809 = vld [vmem:[%s358 + $0x8] sm:$0xf]
        %v810 = vld [vmem:[%s358 + $0xc] sm:$0x1]
        %v811 = vld [vmem:[%s358 + $0x10] sm:$0xf]
        %v812 = vld [vmem:[%s358 + $0x14] sm:$0x1]
        %v813 = vld [vmem:[%s358 + $0x18] sm:$0xf]
        %v814 = vld [vmem:[%s358 + $0x1c] sm:$0x1]
        %v815 = vld [vmem:[%s358 + $0x20] sm:$0xf]
        %v816 = vld [vmem:[%s358 + $0x24] sm:$0x1]
        %v817 = vld [vmem:[%s358 + $0x28] sm:$0xf]
        %v818 = vld [vmem:[%s358 + $0x2c] sm:$0x1]
        %v819 = vld [vmem:[%s358 + $0x30] sm:$0xf]
        %v820 = vld [vmem:[%s358 + $0x34] sm:$0x1]
        %v821 = vld [vmem:[%s358 + $0x38] sm:$0xf]
        %v822 = vld [vmem:[%s358 + $0x3c] sm:$0x1]
        %v823 = vld [vmem:[%s358 + $0x40] sm:$0xf]
        %v824 = vld [vmem:[%s358 + $0x44] sm:$0x1]
        %v825 = vld [vmem:[%s358 + $0x48] sm:$0xf]
        %v826 = vld [vmem:[%s358 + $0x4c] sm:$0x1]
        %v828 = vshrl.u32 %v807, 16
        %v830 = vrot.slane %v828, 4
        %v831 = vshll.u32 %v807, 16
        %v833 = vrot.slane %v831, 5
        %v834 = vor.u32 %v830, %v833
        %v835 = vrot.slane %v834, 4
        %v837 = vshll.u32 %v808, 16
        %v839 = vrot.slane %v837, 5
        %v840 = vsel %vm383, %v835, %v839
        %v842 = vshrl.u32 %v809, 16
        %v844 = vrot.slane %v842, 4
        %v845 = vshll.u32 %v809, 16
        %v847 = vrot.slane %v845, 5
        %v848 = vor.u32 %v844, %v847
        %v849 = vrot.slane %v848, 4
        %v851 = vshll.u32 %v810, 16
        %v853 = vrot.slane %v851, 5
        %v854 = vsel %vm383, %v849, %v853
        %v856 = vshrl.u32 %v811, 16
        %v858 = vrot.slane %v856, 4
        %v859 = vshll.u32 %v811, 16
        %v861 = vrot.slane %v859, 5
        %v862 = vor.u32 %v858, %v861
        %v863 = vrot.slane %v862, 4
        %v865 = vshll.u32 %v812, 16
        %v867 = vrot.slane %v865, 5
        %v868 = vsel %vm383, %v863, %v867
        %v870 = vshrl.u32 %v813, 16
        %v872 = vrot.slane %v870, 4
        %v873 = vshll.u32 %v813, 16
        %v875 = vrot.slane %v873, 5
        %v876 = vor.u32 %v872, %v875
        %v877 = vrot.slane %v876, 4
        %v879 = vshll.u32 %v814, 16
        %v881 = vrot.slane %v879, 5
        %v882 = vsel %vm383, %v877, %v881
        %v884 = vshrl.u32 %v815, 16
        %v886 = vrot.slane %v884, 4
        %v887 = vshll.u32 %v815, 16
        %v889 = vrot.slane %v887, 5
        %v890 = vor.u32 %v886, %v889
        %v891 = vrot.slane %v890, 4
        %v893 = vshll.u32 %v816, 16
        %v895 = vrot.slane %v893, 5
        %v896 = vsel %vm383, %v891, %v895
        %v898 = vshrl.u32 %v817, 16
        %v900 = vrot.slane %v898, 4
        %v901 = vshll.u32 %v817, 16
        %v903 = vrot.slane %v901, 5
        %v904 = vor.u32 %v900, %v903
        %v905 = vrot.slane %v904, 4
        %v907 = vshll.u32 %v818, 16
        %v909 = vrot.slane %v907, 5
        %v910 = vsel %vm383, %v905, %v909
        %v912 = vshrl.u32 %v819, 16
        %v914 = vrot.slane %v912, 4
        %v915 = vshll.u32 %v819, 16
        %v917 = vrot.slane %v915, 5
        %v918 = vor.u32 %v914, %v917
        %v919 = vrot.slane %v918, 4
        %v921 = vshll.u32 %v820, 16
        %v923 = vrot.slane %v921, 5
        %v924 = vsel %vm383, %v919, %v923
        %v926 = vshrl.u32 %v821, 16
        %v928 = vrot.slane %v926, 4
        %v929 = vshll.u32 %v821, 16
        %v931 = vrot.slane %v929, 5
        %v932 = vor.u32 %v928, %v931
        %v933 = vrot.slane %v932, 4
        %v935 = vshll.u32 %v822, 16
        %v937 = vrot.slane %v935, 5
        %v938 = vsel %vm383, %v933, %v937
        %v955 = vrot.slane %v807, 5
        %v956 = vrot.slane %v955, 4
        %v957 = vrot.slane %v808, 5
        %v958 = vsel %vm514, %v956, %v957
        %v959 = vrot.slane %v809, 5
        %v960 = vrot.slane %v959, 4
        %v961 = vrot.slane %v810, 5
        %v962 = vsel %vm514, %v960, %v961
        %v963 = vrot.slane %v811, 5
        %v964 = vrot.slane %v963, 4
        %v965 = vrot.slane %v812, 5
        %v966 = vsel %vm514, %v964, %v965
        %v967 = vrot.slane %v813, 5
        %v968 = vrot.slane %v967, 4
        %v969 = vrot.slane %v814, 5
        %v970 = vsel %vm514, %v968, %v969
        %v971 = vrot.slane %v815, 5
        %v972 = vrot.slane %v971, 4
        %v973 = vrot.slane %v816, 5
        %v974 = vsel %vm514, %v972, %v973
        %v975 = vrot.slane %v817, 5
        %v976 = vrot.slane %v975, 4
        %v977 = vrot.slane %v818, 5
        %v978 = vsel %vm514, %v976, %v977
        %v979 = vrot.slane %v819, 5
        %v980 = vrot.slane %v979, 4
        %v981 = vrot.slane %v820, 5
        %v982 = vsel %vm514, %v980, %v981
        %v983 = vrot.slane %v821, 5
        %v984 = vrot.slane %v983, 4
        %v985 = vrot.slane %v822, 5
        %v986 = vsel %vm514, %v984, %v985
        %v988 = vshrl.u32 %v823, 16
        %v990 = vrot.slane %v988, 4
        %v991 = vshll.u32 %v823, 16
        %v993 = vrot.slane %v991, 5
        %v994 = vor.u32 %v990, %v993
        %v995 = vrot.slane %v994, 4
        %v997 = vshll.u32 %v824, 16
        %v999 = vrot.slane %v997, 5
        %v1000 = vsel %vm383, %v995, %v999
        %v1003 = vrot.slane %v823, 5
        %v1004 = vrot.slane %v1003, 4
        %v1005 = vrot.slane %v824, 5
        %v1006 = vsel %vm514, %v1004, %v1005
        %v1008 = vshrl.u32 %v825, 16
        %v1010 = vrot.slane %v1008, 4
        %v1011 = vshll.u32 %v825, 16
        %v1013 = vrot.slane %v1011, 5
        %v1014 = vor.u32 %v1010, %v1013
        %v1015 = vrot.slane %v1014, 4
        %v1017 = vshll.u32 %v826, 16
        %v1019 = vrot.slane %v1017, 5
        %v1020 = vsel %vm383, %v1015, %v1019
        %v1023 = vrot.slane %v825, 5
        %v1024 = vrot.slane %v1023, 4
        %v1025 = vrot.slane %v826, 5
        %v1026 = vsel %vm514, %v1024, %v1025
        %v1027 = vunpack.c.l.b16 %v361
        %v1028 = vunpack.c.l.b16 %v363
        %v1029 = vunpack.c.l.b16 %v365
        %v1030 = vunpack.c.l.b16 %v367
        %v1031 = vunpack.c.l.b16 %v369
        %v1032 = vunpack.c.l.b16 %v371
        %v1033 = vunpack.c.l.b16 %v373
        %v1034 = vunpack.c.l.b16 %v375
        %v1035 = vpack.c.b16 %v1028, %v1027
        %v1036 = vpack.c.b16 %v1030, %v1029
        %v1037 = vpack.c.b16 %v1032, %v1031
        %v1038 = vpack.c.b16 %v1034, %v1033
        %v1039 = vunpack.c.l.b16 %v397
        %v1040 = vunpack.c.l.b16 %v411
        %v1041 = vunpack.c.l.b16 %v425
        %v1042 = vunpack.c.l.b16 %v439
        %v1043 = vunpack.c.l.b16 %v453
        %v1044 = vunpack.c.l.b16 %v467
        %v1045 = vunpack.c.l.b16 %v481
        %v1046 = vunpack.c.l.b16 %v495
        %v1047 = vpack.c.b16 %v1040, %v1039
        %v1048 = vpack.c.b16 %v1042, %v1041
        %v1049 = vpack.c.b16 %v1044, %v1043
        %v1050 = vpack.c.b16 %v1046, %v1045
        %1051 = vrot.lane.b32.xlu0 %v1047, 8
        %v1052 = vpop.permute.xlu0 %1051
        %1053 = vrot.lane.b32.xlu0 %v1048, 8
        %v1054 = vpop.permute.xlu0 %1053
        %1055 = vrot.lane.b32.xlu0 %v1049, 8
        %v1056 = vpop.permute.xlu0 %1055
        %1057 = vrot.lane.b32.xlu0 %v1050, 8
        %v1058 = vpop.permute.xlu0 %1057
        %v1059 = vunpack.c.l.b16 %v518
        %v1060 = vunpack.c.l.b16 %v522
        %v1061 = vunpack.c.l.b16 %v526
        %v1062 = vunpack.c.l.b16 %v530
        %v1063 = vunpack.c.l.b16 %v534
        %v1064 = vunpack.c.l.b16 %v538
        %v1065 = vunpack.c.l.b16 %v542
        %v1066 = vunpack.c.l.b16 %v546
        %v1067 = vpack.c.b16 %v1060, %v1059
        %v1068 = vpack.c.b16 %v1062, %v1061
        %v1069 = vpack.c.b16 %v1064, %v1063
        %v1070 = vpack.c.b16 %v1066, %v1065
        %1071 = vrot.lane.b32.xlu0 %v1067, 16
        %v1072 = vpop.permute.xlu0 %1071
        %1073 = vrot.lane.b32.xlu0 %v1068, 16
        %v1074 = vpop.permute.xlu0 %1073
        %1075 = vrot.lane.b32.xlu0 %v1069, 16
        %v1076 = vpop.permute.xlu0 %1075
        %1077 = vrot.lane.b32.xlu0 %v1070, 16
        %v1078 = vpop.permute.xlu0 %1077
        %v1079 = vunpack.c.l.b16 %v377
        %v1080 = vpack.c.b16 %v1029, %v1028
        %v1081 = vpack.c.b16 %v1031, %v1030
        %v1082 = vpack.c.b16 %v1033, %v1032
        %v1083 = vpack.c.b16 %v1079, %v1034
        %1084 = vrot.lane.b32.xlu0 %v1080, 24
        %v1085 = vpop.permute.xlu0 %1084
        %1086 = vrot.lane.b32.xlu0 %v1081, 24
        %v1087 = vpop.permute.xlu0 %1086
        %1088 = vrot.lane.b32.xlu0 %v1082, 24
        %v1089 = vpop.permute.xlu0 %1088
        %1090 = vrot.lane.b32.xlu0 %v1083, 24
        %v1091 = vpop.permute.xlu0 %1090
        %v1092 = vunpack.c.l.b16 %v560
        %v1093 = vpack.c.b16 %v1041, %v1040
        %v1094 = vpack.c.b16 %v1043, %v1042
        %v1095 = vpack.c.b16 %v1045, %v1044
        %v1096 = vpack.c.b16 %v1092, %v1046
        %1097 = vrot.lane.b32.xlu0 %v1093, 32
        %v1098 = vpop.permute.xlu0 %1097
        %1099 = vrot.lane.b32.xlu0 %v1094, 32
        %v1100 = vpop.permute.xlu0 %1099
        %1101 = vrot.lane.b32.xlu0 %v1095, 32
        %v1102 = vpop.permute.xlu0 %1101
        %1103 = vrot.lane.b32.xlu0 %v1096, 32
        %v1104 = vpop.permute.xlu0 %1103
        %v1105 = vunpack.c.l.b16 %v566
        %v1106 = vpack.c.b16 %v1061, %v1060
        %v1107 = vpack.c.b16 %v1063, %v1062
        %v1108 = vpack.c.b16 %v1065, %v1064
        %v1109 = vpack.c.b16 %v1105, %v1066
        %1110 = vrot.lane.b32.xlu0 %v1106, 40
        %v1111 = vpop.permute.xlu0 %1110
        %1112 = vrot.lane.b32.xlu0 %v1107, 40
        %v1113 = vpop.permute.xlu0 %1112
        %1114 = vrot.lane.b32.xlu0 %v1108, 40
        %v1115 = vpop.permute.xlu0 %1114
        %1116 = vrot.lane.b32.xlu0 %v1109, 40
        %v1117 = vpop.permute.xlu0 %1116
        %v1118 = vunpack.c.l.b16 %v379
        %v1119 = vpack.c.b16 %v1118, %v1079
        %1120 = vrot.lane.b32.xlu0 %v1036, 48
        %v1121 = vpop.permute.xlu0 %1120
        %1122 = vrot.lane.b32.xlu0 %v1037, 48
        %v1123 = vpop.permute.xlu0 %1122
        %1124 = vrot.lane.b32.xlu0 %v1038, 48
        %v1125 = vpop.permute.xlu0 %1124
        %1126 = vrot.lane.b32.xlu0 %v1119, 48
        %v1127 = vpop.permute.xlu0 %1126
        %v1128 = vunpack.c.l.b16 %v580
        %v1129 = vpack.c.b16 %v1128, %v1092
        %1130 = vrot.lane.b32.xlu0 %v1048, 56
        %v1131 = vpop.permute.xlu0 %1130
        %1132 = vrot.lane.b32.xlu0 %v1049, 56
        %v1133 = vpop.permute.xlu0 %1132
        %1134 = vrot.lane.b32.xlu0 %v1050, 56
        %v1135 = vpop.permute.xlu0 %1134
        %1136 = vrot.lane.b32.xlu0 %v1129, 56
        %v1137 = vpop.permute.xlu0 %1136
        %v1138 = vunpack.c.l.b16 %v586
        %v1139 = vpack.c.b16 %v1138, %v1105
        %1140 = vrot.lane.b32.xlu0 %v1068, 64
        %v1141 = vpop.permute.xlu0 %1140
        %1142 = vrot.lane.b32.xlu0 %v1069, 64
        %v1143 = vpop.permute.xlu0 %1142
        %1144 = vrot.lane.b32.xlu0 %v1070, 64
        %v1145 = vpop.permute.xlu0 %1144
        %1146 = vrot.lane.b32.xlu0 %v1139, 64
        %v1147 = vpop.permute.xlu0 %1146
        %v1148 = vunpack.c.l.b16 %v587
        %v1149 = vunpack.c.l.b16 %v589
        %v1150 = vunpack.c.l.b16 %v591
        %v1151 = vunpack.c.l.b16 %v593
        %v1152 = vunpack.c.l.b16 %v595
        %v1153 = vunpack.c.l.b16 %v597
        %v1154 = vunpack.c.l.b16 %v599
        %v1155 = vunpack.c.l.b16 %v601
        %v1156 = vpack.c.b16 %v1149, %v1148
        %v1157 = vpack.c.b16 %v1151, %v1150
        %v1158 = vpack.c.b16 %v1153, %v1152
        %v1159 = vpack.c.b16 %v1155, %v1154
        %1160 = vrot.lane.b32.xlu0 %v1156, 72
        %v1161 = vpop.permute.xlu0 %1160
        %1162 = vrot.lane.b32.xlu0 %v1157, 72
        %v1163 = vpop.permute.xlu0 %1162
        %1164 = vrot.lane.b32.xlu0 %v1158, 72
        %v1165 = vpop.permute.xlu0 %1164
        %1166 = vrot.lane.b32.xlu0 %v1159, 72
        %v1167 = vpop.permute.xlu0 %1166
        %v1168 = vunpack.c.l.b16 %v620
        %v1169 = vunpack.c.l.b16 %v634
        %v1170 = vunpack.c.l.b16 %v648
        %v1171 = vunpack.c.l.b16 %v662
        %v1172 = vunpack.c.l.b16 %v676
        %v1173 = vunpack.c.l.b16 %v690
        %v1174 = vunpack.c.l.b16 %v704
        %v1175 = vunpack.c.l.b16 %v718
        %v1176 = vpack.c.b16 %v1169, %v1168
        %v1177 = vpack.c.b16 %v1171, %v1170
        %v1178 = vpack.c.b16 %v1173, %v1172
        %v1179 = vpack.c.b16 %v1175, %v1174
        %1180 = vrot.lane.b32.xlu0 %v1176, 80
        %v1181 = vpop.permute.xlu0 %1180
        %1182 = vrot.lane.b32.xlu0 %v1177, 80
        %v1183 = vpop.permute.xlu0 %1182
        %1184 = vrot.lane.b32.xlu0 %v1178, 80
        %v1185 = vpop.permute.xlu0 %1184
        %1186 = vrot.lane.b32.xlu0 %v1179, 80
        %v1187 = vpop.permute.xlu0 %1186
        %v1188 = vunpack.c.l.b16 %v738
        %v1189 = vunpack.c.l.b16 %v742
        %v1190 = vunpack.c.l.b16 %v746
        %v1191 = vunpack.c.l.b16 %v750
        %v1192 = vunpack.c.l.b16 %v754
        %v1193 = vunpack.c.l.b16 %v758
        %v1194 = vunpack.c.l.b16 %v762
        %v1195 = vunpack.c.l.b16 %v766
        %v1196 = vpack.c.b16 %v1189, %v1188
        %v1197 = vpack.c.b16 %v1191, %v1190
        %v1198 = vpack.c.b16 %v1193, %v1192
        %v1199 = vpack.c.b16 %v1195, %v1194
        %1200 = vrot.lane.b32.xlu0 %v1196, 88
        %v1201 = vpop.permute.xlu0 %1200
        %1202 = vrot.lane.b32.xlu0 %v1197, 88
        %v1203 = vpop.permute.xlu0 %1202
        %1204 = vrot.lane.b32.xlu0 %v1198, 88
        %v1205 = vpop.permute.xlu0 %1204
        %1206 = vrot.lane.b32.xlu0 %v1199, 88
        %v1207 = vpop.permute.xlu0 %1206
        %v1208 = vunpack.c.l.b16 %v603
        %v1209 = vpack.c.b16 %v1150, %v1149
        %v1210 = vpack.c.b16 %v1152, %v1151
        %v1211 = vpack.c.b16 %v1154, %v1153
        %v1212 = vpack.c.b16 %v1208, %v1155
        %1213 = vrot.lane.b32.xlu0 %v1209, 96
        %v1214 = vpop.permute.xlu0 %1213
        %1215 = vrot.lane.b32.xlu0 %v1210, 96
        %v1216 = vpop.permute.xlu0 %1215
        %1217 = vrot.lane.b32.xlu0 %v1211, 96
        %v1218 = vpop.permute.xlu0 %1217
        %1219 = vrot.lane.b32.xlu0 %v1212, 96
        %v1220 = vpop.permute.xlu0 %1219
        %v1221 = vunpack.c.l.b16 %v780
        %v1222 = vpack.c.b16 %v1170, %v1169
        %v1223 = vpack.c.b16 %v1172, %v1171
        %v1224 = vpack.c.b16 %v1174, %v1173
        %v1225 = vpack.c.b16 %v1221, %v1175
        %1226 = vrot.lane.b32.xlu0 %v1222, 104
        %v1227 = vpop.permute.xlu0 %1226
        %1228 = vrot.lane.b32.xlu0 %v1223, 104
        %v1229 = vpop.permute.xlu0 %1228
        %1230 = vrot.lane.b32.xlu0 %v1224, 104
        %v1231 = vpop.permute.xlu0 %1230
        %1232 = vrot.lane.b32.xlu0 %v1225, 104
        %v1233 = vpop.permute.xlu0 %1232
        %v1234 = vunpack.c.l.b16 %v786
        %v1235 = vpack.c.b16 %v1190, %v1189
        %v1236 = vpack.c.b16 %v1192, %v1191
        %v1237 = vpack.c.b16 %v1194, %v1193
        %v1238 = vpack.c.b16 %v1234, %v1195
        %1239 = vrot.lane.b32.xlu0 %v1235, 112
        %v1240 = vpop.permute.xlu0 %1239
        %1241 = vrot.lane.b32.xlu0 %v1236, 112
        %v1242 = vpop.permute.xlu0 %1241
        %1243 = vrot.lane.b32.xlu0 %v1237, 112
        %v1244 = vpop.permute.xlu0 %1243
        %1245 = vrot.lane.b32.xlu0 %v1238, 112
        %v1246 = vpop.permute.xlu0 %1245
        %v1247 = vunpack.c.l.b16 %v605
        %v1248 = vpack.c.b16 %v1247, %v1208
        %1249 = vrot.lane.b32.xlu0 %v1157, 120
        %v1250 = vpop.permute.xlu0 %1249
        %1251 = vrot.lane.b32.xlu0 %v1158, 120
        %v1252 = vpop.permute.xlu0 %1251
        %1253 = vrot.lane.b32.xlu0 %v1159, 120
        %v1254 = vpop.permute.xlu0 %1253
        %1255 = vrot.lane.b32.xlu0 %v1248, 120
        %v1256 = vpop.permute.xlu0 %1255
        %vm1257 = vcmask 64512
        %v1260 = vsel %vm1257, %v1035, %v1052
        %v1263 = vsel %vm1257, %v1036, %v1054
        %v1266 = vsel %vm1257, %v1037, %v1056
        %v1269 = vsel %vm1257, %v1038, %v1058
        %vm1270 = vcmask 130048
        %v1272 = vsel %vm1270, %v1260, %v1072
        %v1274 = vsel %vm1270, %v1263, %v1074
        %v1276 = vsel %vm1270, %v1266, %v1076
        %v1278 = vsel %vm1270, %v1269, %v1078
        %vm1279 = vcmask 195584
        %v1281 = vsel %vm1279, %v1272, %v1085
        %v1283 = vsel %vm1279, %v1274, %v1087
        %v1285 = vsel %vm1279, %v1276, %v1089
        %v1287 = vsel %vm1279, %v1278, %v1091
        %vm1288 = vcmask 261120
        %v1290 = vsel %vm1288, %v1281, %v1098
        %v1292 = vsel %vm1288, %v1283, %v1100
        %v1294 = vsel %vm1288, %v1285, %v1102
        %v1296 = vsel %vm1288, %v1287, %v1104
        %vm1297 = vcmask 326656
        %v1299 = vsel %vm1297, %v1290, %v1111
        %v1301 = vsel %vm1297, %v1292, %v1113
        %v1303 = vsel %vm1297, %v1294, %v1115
        %v1305 = vsel %vm1297, %v1296, %v1117
        %vm1306 = vcmask 392192
        %v1308 = vsel %vm1306, %v1299, %v1121
        %v1310 = vsel %vm1306, %v1301, %v1123
        %v1312 = vsel %vm1306, %v1303, %v1125
        %v1314 = vsel %vm1306, %v1305, %v1127
        %vm1315 = vcmask 457728
        %v1317 = vsel %vm1315, %v1308, %v1131
        %v1319 = vsel %vm1315, %v1310, %v1133
        %v1321 = vsel %vm1315, %v1312, %v1135
        %v1323 = vsel %vm1315, %v1314, %v1137
        %vm1324 = vcmask 523264
        %v1326 = vsel %vm1324, %v1317, %v1141
        %v1328 = vsel %vm1324, %v1319, %v1143
        %v1330 = vsel %vm1324, %v1321, %v1145
        %v1332 = vsel %vm1324, %v1323, %v1147
        %vm1333 = vcmask 588800
        %v1335 = vsel %vm1333, %v1326, %v1161
        %v1337 = vsel %vm1333, %v1328, %v1163
        %v1339 = vsel %vm1333, %v1330, %v1165
        %v1341 = vsel %vm1333, %v1332, %v1167
        %vm1342 = vcmask 654336
        %v1344 = vsel %vm1342, %v1335, %v1181
        %v1346 = vsel %vm1342, %v1337, %v1183
        %v1348 = vsel %vm1342, %v1339, %v1185
        %v1350 = vsel %vm1342, %v1341, %v1187
        %vm1351 = vcmask 719872
        %v1353 = vsel %vm1351, %v1344, %v1201
        %v1355 = vsel %vm1351, %v1346, %v1203
        %v1357 = vsel %vm1351, %v1348, %v1205
        %v1359 = vsel %vm1351, %v1350, %v1207
        %vm1360 = vcmask 785408
        %v1362 = vsel %vm1360, %v1353, %v1214
        %v1364 = vsel %vm1360, %v1355, %v1216
        %v1366 = vsel %vm1360, %v1357, %v1218
        %v1368 = vsel %vm1360, %v1359, %v1220
        %vm1369 = vcmask 850944
        %v1371 = vsel %vm1369, %v1362, %v1227
        %v1373 = vsel %vm1369, %v1364, %v1229
        %v1375 = vsel %vm1369, %v1366, %v1231
        %v1377 = vsel %vm1369, %v1368, %v1233
        %vm1378 = vcmask 916480
        %v1380 = vsel %vm1378, %v1371, %v1240
        %v1382 = vsel %vm1378, %v1373, %v1242
        %v1384 = vsel %vm1378, %v1375, %v1244
        %v1386 = vsel %vm1378, %v1377, %v1246
        %vm1387 = vcmask 982016
        %v1389 = vsel %vm1387, %v1380, %v1250
        %v1392 = vsel %vm1387, %v1382, %v1252
        %v1395 = vsel %vm1387, %v1384, %v1254
        %v1398 = vsel %vm1387, %v1386, %v1256
        %v1400 = vunpack.c.l.b16 %v800
        %v1401 = vpack.c.b16 %v1400, %v1221
        %v1402 = vunpack.c.l.b16 %v806
        %v1403 = vpack.c.b16 %v1402, %v1234
        %1404 = vrot.lane.b32.xlu0 %v1197, 8
        %v1405 = vpop.permute.xlu0 %1404
        %1406 = vrot.lane.b32.xlu0 %v1198, 8
        %v1407 = vpop.permute.xlu0 %1406
        %1408 = vrot.lane.b32.xlu0 %v1199, 8
        %v1409 = vpop.permute.xlu0 %1408
        %1410 = vrot.lane.b32.xlu0 %v1403, 8
        %v1411 = vpop.permute.xlu0 %1410
        %v1412 = vunpack.c.l.b16 %v807
        %v1413 = vunpack.c.l.b16 %v809
        %v1414 = vunpack.c.l.b16 %v811
        %v1415 = vunpack.c.l.b16 %v813
        %v1416 = vunpack.c.l.b16 %v815
        %v1417 = vunpack.c.l.b16 %v817
        %v1418 = vunpack.c.l.b16 %v819
        %v1419 = vunpack.c.l.b16 %v821
        %v1420 = vpack.c.b16 %v1413, %v1412
        %v1421 = vpack.c.b16 %v1415, %v1414
        %v1422 = vpack.c.b16 %v1417, %v1416
        %v1423 = vpack.c.b16 %v1419, %v1418
        %1424 = vrot.lane.b32.xlu0 %v1420, 16
        %v1425 = vpop.permute.xlu0 %1424
        %1426 = vrot.lane.b32.xlu0 %v1421, 16
        %v1427 = vpop.permute.xlu0 %1426
        %1428 = vrot.lane.b32.xlu0 %v1422, 16
        %v1429 = vpop.permute.xlu0 %1428
        %1430 = vrot.lane.b32.xlu0 %v1423, 16
        %v1431 = vpop.permute.xlu0 %1430
        %v1432 = vunpack.c.l.b16 %v840
        %v1433 = vunpack.c.l.b16 %v854
        %v1434 = vunpack.c.l.b16 %v868
        %v1435 = vunpack.c.l.b16 %v882
        %v1436 = vunpack.c.l.b16 %v896
        %v1437 = vunpack.c.l.b16 %v910
        %v1438 = vunpack.c.l.b16 %v924
        %v1439 = vunpack.c.l.b16 %v938
        %v1440 = vpack.c.b16 %v1433, %v1432
        %v1441 = vpack.c.b16 %v1435, %v1434
        %v1442 = vpack.c.b16 %v1437, %v1436
        %v1443 = vpack.c.b16 %v1439, %v1438
        %1444 = vrot.lane.b32.xlu0 %v1440, 24
        %v1445 = vpop.permute.xlu0 %1444
        %1446 = vrot.lane.b32.xlu0 %v1441, 24
        %v1447 = vpop.permute.xlu0 %1446
        %1448 = vrot.lane.b32.xlu0 %v1442, 24
        %v1449 = vpop.permute.xlu0 %1448
        %1450 = vrot.lane.b32.xlu0 %v1443, 24
        %v1451 = vpop.permute.xlu0 %1450
        %v1452 = vunpack.c.l.b16 %v958
        %v1453 = vunpack.c.l.b16 %v962
        %v1454 = vunpack.c.l.b16 %v966
        %v1455 = vunpack.c.l.b16 %v970
        %v1456 = vunpack.c.l.b16 %v974
        %v1457 = vunpack.c.l.b16 %v978
        %v1458 = vunpack.c.l.b16 %v982
        %v1459 = vunpack.c.l.b16 %v986
        %v1460 = vpack.c.b16 %v1453, %v1452
        %v1461 = vpack.c.b16 %v1455, %v1454
        %v1462 = vpack.c.b16 %v1457, %v1456
        %v1463 = vpack.c.b16 %v1459, %v1458
        %1464 = vrot.lane.b32.xlu0 %v1460, 32
        %v1465 = vpop.permute.xlu0 %1464
        %1466 = vrot.lane.b32.xlu0 %v1461, 32
        %v1467 = vpop.permute.xlu0 %1466
        %1468 = vrot.lane.b32.xlu0 %v1462, 32
        %v1469 = vpop.permute.xlu0 %1468
        %1470 = vrot.lane.b32.xlu0 %v1463, 32
        %v1471 = vpop.permute.xlu0 %1470
        %v1472 = vunpack.c.l.b16 %v823
        %v1473 = vpack.c.b16 %v1414, %v1413
        %v1474 = vpack.c.b16 %v1416, %v1415
        %v1475 = vpack.c.b16 %v1418, %v1417
        %v1476 = vpack.c.b16 %v1472, %v1419
        %1477 = vrot.lane.b32.xlu0 %v1473, 40
        %v1478 = vpop.permute.xlu0 %1477
        %1479 = vrot.lane.b32.xlu0 %v1474, 40
        %v1480 = vpop.permute.xlu0 %1479
        %1481 = vrot.lane.b32.xlu0 %v1475, 40
        %v1482 = vpop.permute.xlu0 %1481
        %1483 = vrot.lane.b32.xlu0 %v1476, 40
        %v1484 = vpop.permute.xlu0 %1483
        %v1485 = vunpack.c.l.b16 %v1000
        %v1486 = vpack.c.b16 %v1434, %v1433
        %v1487 = vpack.c.b16 %v1436, %v1435
        %v1488 = vpack.c.b16 %v1438, %v1437
        %v1489 = vpack.c.b16 %v1485, %v1439
        %1490 = vrot.lane.b32.xlu0 %v1486, 48
        %v1491 = vpop.permute.xlu0 %1490
        %1492 = vrot.lane.b32.xlu0 %v1487, 48
        %v1493 = vpop.permute.xlu0 %1492
        %1494 = vrot.lane.b32.xlu0 %v1488, 48
        %v1495 = vpop.permute.xlu0 %1494
        %1496 = vrot.lane.b32.xlu0 %v1489, 48
        %v1497 = vpop.permute.xlu0 %1496
        %v1498 = vunpack.c.l.b16 %v1006
        %v1499 = vpack.c.b16 %v1454, %v1453
        %v1500 = vpack.c.b16 %v1456, %v1455
        %v1501 = vpack.c.b16 %v1458, %v1457
        %v1502 = vpack.c.b16 %v1498, %v1459
        %1503 = vrot.lane.b32.xlu0 %v1499, 56
        %v1504 = vpop.permute.xlu0 %1503
        %1505 = vrot.lane.b32.xlu0 %v1500, 56
        %v1506 = vpop.permute.xlu0 %1505
        %1507 = vrot.lane.b32.xlu0 %v1501, 56
        %v1508 = vpop.permute.xlu0 %1507
        %1509 = vrot.lane.b32.xlu0 %v1502, 56
        %v1510 = vpop.permute.xlu0 %1509
        %v1511 = vunpack.c.l.b16 %v825
        %v1512 = vpack.c.b16 %v1511, %v1472
        %1513 = vrot.lane.b32.xlu0 %v1421, 64
        %v1514 = vpop.permute.xlu0 %1513
        %1515 = vrot.lane.b32.xlu0 %v1422, 64
        %v1516 = vpop.permute.xlu0 %1515
        %1517 = vrot.lane.b32.xlu0 %v1423, 64
        %v1518 = vpop.permute.xlu0 %1517
        %1519 = vrot.lane.b32.xlu0 %v1512, 64
        %v1520 = vpop.permute.xlu0 %1519
        %v1521 = vunpack.c.l.b16 %v1020
        %v1522 = vpack.c.b16 %v1521, %v1485
        %1523 = vrot.lane.b32.xlu0 %v1441, 72
        %v1524 = vpop.permute.xlu0 %1523
        %1525 = vrot.lane.b32.xlu0 %v1442, 72
        %v1526 = vpop.permute.xlu0 %1525
        %1527 = vrot.lane.b32.xlu0 %v1443, 72
        %v1528 = vpop.permute.xlu0 %1527
        %1529 = vrot.lane.b32.xlu0 %v1522, 72
        %v1530 = vpop.permute.xlu0 %1529
        %v1531 = vunpack.c.l.b16 %v1026
        %v1532 = vpack.c.b16 %v1531, %v1498
        %1533 = vrot.lane.b32.xlu0 %v1461, 80
        %v1534 = vpop.permute.xlu0 %1533
        %1535 = vrot.lane.b32.xlu0 %v1462, 80
        %v1536 = vpop.permute.xlu0 %1535
        %1537 = vrot.lane.b32.xlu0 %v1463, 80
        %v1538 = vpop.permute.xlu0 %1537
        %1539 = vrot.lane.b32.xlu0 %v1532, 80
        %v1540 = vpop.permute.xlu0 %1539
        %v1543 = vsel %vm1257, %v1177, %v1405
        %v1546 = vsel %vm1257, %v1178, %v1407
        %v1549 = vsel %vm1257, %v1179, %v1409
        %v1552 = vsel %vm1257, %v1401, %v1411
        %v1554 = vsel %vm1270, %v1543, %v1425
        %v1556 = vsel %vm1270, %v1546, %v1427
        %v1558 = vsel %vm1270, %v1549, %v1429
        %v1560 = vsel %vm1270, %v1552, %v1431
        %v1562 = vsel %vm1279, %v1554, %v1445
        %v1564 = vsel %vm1279, %v1556, %v1447
        %v1566 = vsel %vm1279, %v1558, %v1449
        %v1568 = vsel %vm1279, %v1560, %v1451
        %v1570 = vsel %vm1288, %v1562, %v1465
        %v1572 = vsel %vm1288, %v1564, %v1467
        %v1574 = vsel %vm1288, %v1566, %v1469
        %v1576 = vsel %vm1288, %v1568, %v1471
        %v1578 = vsel %vm1297, %v1570, %v1478
        %v1580 = vsel %vm1297, %v1572, %v1480
        %v1582 = vsel %vm1297, %v1574, %v1482
        %v1584 = vsel %vm1297, %v1576, %v1484
        %v1586 = vsel %vm1306, %v1578, %v1491
        %v1588 = vsel %vm1306, %v1580, %v1493
        %v1590 = vsel %vm1306, %v1582, %v1495
        %v1592 = vsel %vm1306, %v1584, %v1497
        %v1594 = vsel %vm1315, %v1586, %v1504
        %v1596 = vsel %vm1315, %v1588, %v1506
        %v1598 = vsel %vm1315, %v1590, %v1508
        %v1600 = vsel %vm1315, %v1592, %v1510
        %v1602 = vsel %vm1324, %v1594, %v1514
        %v1604 = vsel %vm1324, %v1596, %v1516
        %v1606 = vsel %vm1324, %v1598, %v1518
        %v1608 = vsel %vm1324, %v1600, %v1520
        %v1610 = vsel %vm1333, %v1602, %v1524
        %v1612 = vsel %vm1333, %v1604, %v1526
        %v1614 = vsel %vm1333, %v1606, %v1528
        %v1616 = vsel %vm1333, %v1608, %v1530
        %v1618 = vsel %vm1342, %v1610, %v1534
        %v1620 = vsel %vm1342, %v1612, %v1536
        %v1622 = vsel %vm1342, %v1614, %v1538
        %v1624 = vsel %vm1342, %v1616, %v1540
        %v1625 = vld [vmem:[%s3] sm:$0xf]
        %v1626 = vld [vmem:[%s3 + $0x4] sm:$0xf]
        %v1627 = vld [vmem:[%s3 + $0x8] sm:$0xf]
        %v1628 = vld [vmem:[%s3 + $0xc] sm:$0xf]
        %v1629 = vld [vmem:[%s3 + $0x10] sm:$0xf]
        %v1630 = vld [vmem:[%s3 + $0x14] sm:$0xf]
        %v1631 = vld [vmem:[%s3 + $0x18] sm:$0xf]
        %v1632 = vld [vmem:[%s3 + $0x1c] sm:$0xf]
        %v1633 = vld [vmem:[%s3 + $0x20] sm:$0xf]
        %v1634 = vld [vmem:[%s3 + $0x24] sm:$0xf]
        %v1635 = vld [vmem:[%s3 + $0x28] sm:$0xf]
        %v1636 = vld [vmem:[%s3 + $0x2c] sm:$0xf]
        %v1637 = vld [vmem:[%s3 + $0x30] sm:$0xf]
        %v1638 = vld [vmem:[%s3 + $0x34] sm:$0xf]
        %v1639 = vld [vmem:[%s3 + $0x38] sm:$0xf]
        %v1640 = vld [vmem:[%s3 + $0x3c] sm:$0xf]
        %v1641 = vld [vmem:[%s3 + $0x40] sm:$0xf]
        %v1642 = vld [vmem:[%s3 + $0x44] sm:$0xf]
        %v1643 = vld [vmem:[%s3 + $0x48] sm:$0xf]
        %v1644 = vld [vmem:[%s3 + $0x4c] sm:$0xf]
        %v1645 = vld [vmem:[%s3 + $0x50] sm:$0xf]
        %v1646 = vld [vmem:[%s3 + $0x54] sm:$0xf]
        %v1647 = vld [vmem:[%s3 + $0x58] sm:$0xf]
        %v1648 = vld [vmem:[%s3 + $0x5c] sm:$0xf]
        %v1649 = vld [vmem:[%s3 + $0x60] sm:$0xf]
        %v1650 = vld [vmem:[%s3 + $0x64] sm:$0xf]
        %v1651 = vld [vmem:[%s3 + $0x68] sm:$0xf]
        %v1679 = vunpack.c.l.b16 %v1625
        %v1680 = vunpack.c.l.b16 %v1626
        %v1681 = vunpack.c.l.b16 %v1627
        %v1682 = vunpack.c.l.b16 %v1628
        %v1683 = vunpack.c.l.b16 %v1629
        %v1684 = vunpack.c.l.b16 %v1630
        %v1685 = vunpack.c.l.b16 %v1631
        %v1686 = vunpack.c.l.b16 %v1632
        %v1687 = vunpack.c.l.b16 %v1633
        %v1688 = vunpack.c.l.b16 %v1634
        %v1689 = vunpack.c.l.b16 %v1635
        %v1690 = vunpack.c.l.b16 %v1636
        %v1691 = vunpack.c.l.b16 %v1637
        %v1692 = vunpack.c.l.b16 %v1638
        %v1693 = vunpack.c.l.b16 %v1639
        %v1694 = vunpack.c.l.b16 %v1640
        %v1695 = vunpack.c.l.b16 %v1641
        %v1696 = vunpack.c.l.b16 %v1642
        %v1697 = vunpack.c.l.b16 %v1643
        %v1698 = vunpack.c.l.b16 %v1644
        %v1699 = vunpack.c.l.b16 %v1645
        %v1700 = vunpack.c.l.b16 %v1646
        %v1701 = vunpack.c.l.b16 %v1647
        %v1702 = vunpack.c.l.b16 %v1648
        %v1703 = vunpack.c.l.b16 %v1649
        %v1704 = vunpack.c.l.b16 %v1650
        %v1705 = vunpack.c.l.b16 %v1651
        %v1706 = vpack.c.b16 %v1680, %v1679
        %v1707 = vpack.c.b16 %v1682, %v1681
        %v1708 = vpack.c.b16 %v1684, %v1683
        %v1709 = vpack.c.b16 %v1686, %v1685
        %v1710 = vpack.c.b16 %v1688, %v1687
        %v1711 = vpack.c.b16 %v1690, %v1689
        %v1712 = vpack.c.b16 %v1692, %v1691
        %v1713 = vpack.c.b16 %v1694, %v1693
        %v1714 = vpack.c.b16 %v1696, %v1695
        %v1715 = vpack.c.b16 %v1698, %v1697
        %v1716 = vpack.c.b16 %v1700, %v1699
        %v1717 = vpack.c.b16 %v1702, %v1701
        %v1718 = vpack.c.b16 %v1704, %v1703
        %v1719 = vpack.c.b16 %v1705, %v1705
        %v1733 = vsel %vm1351, %v1618, 0
        %v1735 = vsel %vm1351, %v1620, 0
        %v1737 = vsel %vm1351, %v1622, 0
        %v1739 = vsel %vm1351, %v1624, 0
        %vm1741 = vcmask 1043456
        %v1743 = vsel %vm1741, %v1719, 0
        %1745 = vmatpush.bf16.msra.mxu0 %v1713
        %1746 = vmatpush.bf16.msra.mxu0 %v1712
        %1747 = vmatpush.bf16.msra.mxu0 %v1711
        %1748 = vmatpush.bf16.msra.mxu0 %v1710
        %1749 = vmatpush.bf16.msra.mxu0 %v1709
        %1750 = vmatpush.bf16.msra.mxu0 %v1708
        %1751 = vmatpush.bf16.msra.mxu0 %v1707
        %1752 = vmatpush.bf16.msra.mxu0 %v1706
        %1753 = vmatmul.bf16.gmra.mxu0 %v1389
        %v1754 = vpop.f32.mrf.mxu0
        %v1755 = vadd.f32 0.0, %v1754
        %v1756 = vpop.f32.mrf.mxu0
        %v1757 = vadd.f32 0.0, %v1756
        %1758 = vmatmul.bf16.gmra.mxu0 %v1392
        %v1759 = vpop.f32.mrf.mxu0
        %v1760 = vadd.f32 0.0, %v1759
        %v1761 = vpop.f32.mrf.mxu0
        %v1762 = vadd.f32 0.0, %v1761
        %1763 = vmatmul.bf16.gmra.mxu0 %v1395
        %v1764 = vpop.f32.mrf.mxu0
        %v1765 = vadd.f32 0.0, %v1764
        %v1766 = vpop.f32.mrf.mxu0
        %v1767 = vadd.f32 0.0, %v1766
        %1768 = vmatmul.bf16.gmra.mxu0 %v1398
        %v1769 = vpop.f32.mrf.mxu0
        %v1770 = vadd.f32 0.0, %v1769
        %v1771 = vpop.f32.mrf.mxu0
        %v1772 = vadd.f32 0.0, %v1771
        %1773 = vdwg.mxu0
        %1774 = vmatpush.bf16.msra.mxu0 0
        %1775 = vmatpush.bf16.msra.mxu0 0
        %1776 = vmatpush.bf16.msra.mxu0 %v1743
        %1777 = vmatpush.bf16.msra.mxu0 %v1718
        %1778 = vmatpush.bf16.msra.mxu0 %v1717
        %1779 = vmatpush.bf16.msra.mxu0 %v1716
        %1780 = vmatpush.bf16.msra.mxu0 %v1715
        %1781 = vmatpush.bf16.msra.mxu0 %v1714
        %1782 = vmatmul.bf16.gmra.mxu0 %v1733
        %v1783 = vpop.f32.mrf.mxu0
        %v1784 = vadd.f32 %v1755, %v1783
        %v1785 = vpop.f32.mrf.mxu0
        %v1786 = vadd.f32 %v1757, %v1785
        %1787 = vmatmul.bf16.gmra.mxu0 %v1735
        %v1788 = vpop.f32.mrf.mxu0
        %v1789 = vadd.f32 %v1760, %v1788
        %v1790 = vpop.f32.mrf.mxu0
        %v1791 = vadd.f32 %v1762, %v1790
        %1792 = vmatmul.bf16.gmra.mxu0 %v1737
        %v1793 = vpop.f32.mrf.mxu0
        %v1794 = vadd.f32 %v1765, %v1793
        %v1795 = vpop.f32.mrf.mxu0
        %v1796 = vadd.f32 %v1767, %v1795
        %1797 = vmatmul.bf16.gmra.mxu0 %v1739
        %v1798 = vpop.f32.mrf.mxu0
        %v1799 = vadd.f32 %v1770, %v1798
        %v1800 = vpop.f32.mrf.mxu0
        %v1801 = vadd.f32 %v1772, %v1800
        %1802 = vdwg.mxu0
        %v1803 = vld [vmem:[%s4] sm:$0x1]
        %v1805 = vperm.slane %v1803, 0
        %v1807 = vmul.f32 %v1784, %v1805
        %v1808 = vmul.f32 %v1786, %v1805
        %v1809 = vmul.f32 %v1789, %v1805
        %v1810 = vmul.f32 %v1791, %v1805
        %v1811 = vmul.f32 %v1794, %v1805
        %v1812 = vmul.f32 %v1796, %v1805
        %v1813 = vmul.f32 %v1799, %v1805
        %v1814 = vmul.f32 %v1801, %v1805
        %v1815 = vld [vmem:[%s5] sm:$0x1]
        %v1817 = vperm.slane %v1815, 0
        %v1819 = vadd.f32 %v1807, %v1817
        %v1820 = vadd.f32 %v1808, %v1817
        %v1821 = vadd.f32 %v1809, %v1817
        %v1822 = vadd.f32 %v1810, %v1817
        %v1823 = vadd.f32 %v1811, %v1817
        %v1824 = vadd.f32 %v1812, %v1817
        %v1825 = vadd.f32 %v1813, %v1817
        %v1826 = vadd.f32 %v1814, %v1817
        %v1827 = vmax.f32 %v1819, 0.0
        %v1828 = vmax.f32 %v1820, 0.0
        %v1829 = vmax.f32 %v1821, 0.0
        %v1830 = vmax.f32 %v1822, 0.0
        %v1831 = vmax.f32 %v1823, 0.0
        %v1832 = vmax.f32 %v1824, 0.0
        %v1833 = vmax.f32 %v1825, 0.0
        %v1834 = vmax.f32 %v1826, 0.0
        %1835 = vst [vmem:[%s328] sm:$0xff] %v1827
        %1836 = vst [vmem:[%s328 + $0x8] sm:$0xff] %v1828
        %1837 = vst [vmem:[%s328 + $0x10] sm:$0xff] %v1829
        %1838 = vst [vmem:[%s328 + $0x18] sm:$0xff] %v1830
        %1839 = vst [vmem:[%s328 + $0x20] sm:$0xff] %v1831
        %1840 = vst [vmem:[%s328 + $0x28] sm:$0xff] %v1832
        %1841 = vst [vmem:[%s328 + $0x30] sm:$0xff] %v1833
        %1842 = vst [vmem:[%s328 + $0x38] sm:$0xff] %v1834
        %s1843 = sand.u32 %s193, 1
        %s1844 = scalar_lea.sflag [#allocation3], %s1843
        %s1845 = sand.u32 %s193, 1
        %s1846 = smul.addr %s1845, 64
        %s1847 = scalar_lea.vmem [#allocation2], %s1846
        // Predicated region
        $region45: #{tpu_custom_call.1} parent=43 // pred_check
          %p1848 = pneg %p203
        $region46: #{tpu_custom_call.1} parent=43 // pred_check_branch
          %1850 = sbr.rel (%p1848) target = $region48
        $region47: #{tpu_custom_call.1} parent=43 // pred_region
          %1852 = vsyncadd %s1844, 0
          %s1853 = smul.addr %s25, 8
          %s1854 = smul.addr %s24, 64
          %s1855 = sadd.s32 %s1853, %s1854
          %s1856 = smul.addr %s1855, 8
          %s1857 = scalar_lea.hbm %s6, %s1856
          %s1858 = sshll.u32 %s1847, 4
          %s1859 = int_to_ptr.vmem [resolvable:$true] %s1858
          %s1860 = sshll.u32 %s1857, 4
          %s1861 = int_to_ptr.hbm [resolvable:$true] %s1860
          %1866 = dma.vmem_to_hbm [thread:$0]  %s1859, 1024, %s1861, %s1844, 128, 128, 8
        $region48: #{tpu_custom_call.1} parent=43 // pred_fallthru
          _
      $region44: #{tpu_custom_call.1} parent=5 // pred_fallthru
        _
      %p1867 = scmp.le.s32.totalorder 2, %s15
      // Predicated region
      $region49: #{tpu_custom_call.1} parent=5 // pred_check
        %p1868 = pneg %p1867
      $region50: #{tpu_custom_call.1} parent=5 // pred_check_branch
        %1870 = sbr.rel (%p1868) target = $region52
      $region51: #{tpu_custom_call.1} parent=5 // pred_region
        %s1871 = ssub.s32 %s15, 2
        // Predicated region
        $region53: #{tpu_custom_call.1} parent=51 // pred_check
          %p1872 = pneg %p209
        $region54: #{tpu_custom_call.1} parent=51 // pred_check_branch
          %1874 = sbr.rel (%p1872) target = $region56
        $region55: #{tpu_custom_call.1} parent=51 // pred_region
          %s1875 = sand.u32 %s194, 1
          %s1876 = scalar_lea.sflag [#allocation3], %s1875
          %s1877 = sand.u32 %s194, 1
          %s1878 = smul.addr %s1877, 64
          %s1879 = scalar_lea.vmem [#allocation2], %s1878
          %1881 = dma.done %s1876, 1024
        $region56: #{tpu_custom_call.1} parent=51 // pred_fallthru
          _
      $region52: #{tpu_custom_call.1} parent=5 // pred_fallthru
        _
    $region6: #{tpu_custom_call.1} parent=1 // loop_footer
      %s19 = sadd.s32 1, %s15
    $region7: #{tpu_custom_call.1} parent=1 // loop_footer_branch
      %14 = sbr.rel target = $region3
    $region8: #{tpu_custom_call.1} parent=1 // loop_exit
      _
    %1882 = vsyncpa [#allocation3], 1
    %s1883 = scalar_lea.sflag [#allocation3], 1
    %1884 = vsyncpa %s1883, 1

</llo_original>
